<compile_context>
chip_gen: v7x
topology: tpu7x:2x2x1
jax: 0.10.0
libtpu: 0.0.40
codegen_flags: <defaults>
</compile_context>

<pallas_src>
import jax
import jax.numpy as jnp
from jax import lax
from jax.experimental import pallas as pl
from jax.experimental.pallas import tpu as pltpu


# ----------------------------- fused Pallas kernel ------------------------------ #

def _make_fused_kernel(num_gin_layers, eps, hidden_dim, n_actions):
    """GIN stack + pooling + actor(+mask+softmax) + critic; Bt graphs per grid step."""
    H = hidden_dim
    JM = n_actions

    def kernel(adj_ref, x_ref, gp_ref, cand_ref, mach_ref, mask_ref,
               gin_w_ref, gin_b_ref, actor_ref, critic_ref, out_ref):
        f32 = jnp.float32
        Bt, N, _ = adj_ref.shape
        LANE = out_ref.shape[-1]
        Ha = actor_ref.shape[0]

        adj = adj_ref[...]                                     # (Bt, N, N)
        h3 = x_ref[...]                                        # (Bt, N, H)  (F_in zero-padded)

        # ---- GIN stack: batched adj@h, shared-weight MLP flattened to (Bt*N, H) ----
        for l in range(num_gin_layers):
            w1 = gin_w_ref[2 * l]                              # (H, H) (layer-0 pad rows are 0)
            b1 = gin_b_ref[2 * l]                              # (1, H)
            w2 = gin_w_ref[2 * l + 1]
            b2 = gin_b_ref[2 * l + 1]
            agg = jnp.einsum('bij,bjh->bih', adj, h3, preferred_element_type=f32)
            agg = agg + h3 if eps == 0.0 else agg + (1.0 + eps) * h3   # skip mul when eps == 0
            a2d = agg.reshape(Bt * N, H)                       # one MXU pass for all Bt graphs
            z = jnp.maximum(jnp.dot(a2d, w1, preferred_element_type=f32) + b1, 0.0)
            h2d = jnp.maximum(jnp.dot(z, w2, preferred_element_type=f32) + b2, 0.0)
            h3 = h2d.reshape(Bt, N, H)

        # ---- graph pooling (h stays in VMEM) ----
        h_pool3 = jnp.einsum('bon,bnh->boh', gp_ref[...], h3,
                             preferred_element_type=f32)       # (Bt, 1, H)
        h_pool = h_pool3.reshape(Bt, H)

        # ---- critic head: final (Hc,1) projection as VPU multiply + lane reduction ----
        cw1 = critic_ref[0:H, :]                               # (H, Hc)
        cb1 = critic_ref[H:H + 1, :]                           # (1, Hc)
        cw2 = critic_ref[H + 1:H + 2, :]                       # (1, Hc)
        cb2 = critic_ref[H + 2:H + 3, 0:1]                     # (1, 1)
        hc = jnp.tanh(jnp.dot(h_pool, cw1, preferred_element_type=f32) + cb1)   # (Bt, Hc)
        v = jnp.sum(hc * cw2, axis=-1, keepdims=True) + cb2                      # (Bt, 1)

        # ---- actor head, transposed so the JM actions live on the lane axis ----
        w1cT = actor_ref[:, 0:H]                               # (Ha, H)
        w1mT = actor_ref[:, H:H + 4]                           # (Ha, 4)
        w1pT = actor_ref[:, H + 4:2 * H + 4]                   # (Ha, H)
        ab1c = actor_ref[:, 2 * H + 4:2 * H + 5]               # (Ha, 1)
        aw2c = actor_ref[:, 2 * H + 5:2 * H + 6]               # (Ha, 1)
        ab2 = actor_ref[0:1, 2 * H + 6:2 * H + 7]              # (1, 1)

        # One-hot gather matrix gt[b,n,a] = (candidate of action a == node n); this both gathers
        # the per-job candidate feature and realizes repeat_interleave over machines, so
        # concat_feat never exists.
        # TODO(synk): at production N/JM replace the dense one-hot with scalar-prefetched
        # candidate indices + pl.ds row selects (saves N*JM VMEM and an MXU pass).
        gt = (lax.broadcasted_iota(jnp.int32, (Bt, N, LANE), 1)
              == cand_ref[...]).astype(f32)                    # (Bt, N, LANE)
        a_t = jnp.einsum('bkh,bnh->bkn', jnp.broadcast_to(w1cT, (Bt, Ha, H)), h3,
                         preferred_element_type=f32)           # (Bt, Ha, N)
        cand_t = jnp.einsum('bkn,bna->bka', a_t, gt,
                            preferred_element_type=f32)        # (Bt, Ha, LANE)
        mach_t = jnp.einsum('bkf,bfa->bka', jnp.broadcast_to(w1mT, (Bt, Ha, 4)), mach_ref[...],
                            preferred_element_type=f32)        # (Bt, Ha, LANE)
        pool_t = jnp.sum(w1pT[None, :, :] * h_pool3, axis=-1, keepdims=True)   # (Bt, Ha, 1)

        h_act = jnp.tanh(cand_t + mach_t + pool_t + ab1c[None, :, :])          # (Bt, Ha, LANE)

        # final (Ha,1) projection as VPU multiply + sublane reduce -> lane-dense (Bt,1,LANE)
        scores = jnp.sum(h_act * aw2c[None, :, :], axis=1, keepdims=True) + ab2

        # mask (incl. lane padding) -> large finite negative (robust to fully-masked rows)
        scores = jnp.where(mask_ref[...] > 0.5, f32(-1e30), scores)
        m = jnp.max(scores, axis=-1, keepdims=True)                             # lane reduction
        e = jnp.exp(scores - m)
        pi = e * pl.reciprocal(jnp.sum(e, axis=-1, keepdims=True), approx=True)  # (Bt,1,LANE)

        # pack pi (lanes 0..JM-1) and v (lane JM) into ONE lane-dense (Bt,1,LANE) store
        lane = lax.broadcasted_iota(jnp.int32, (Bt, 1, LANE), 2)
        out_ref[...] = jnp.where(lane == JM, v.reshape(Bt, 1, 1), pi)

    return kernel


def _choose_batch_tile(batch, max_bt):
    """Largest divisor of `batch` <= max_bt, preferring grid length >= 2 (v7x has 2 TCs)."""
    divs = [d for d in range(1, min(batch, max_bt) + 1) if batch % d == 0]
    pref = [d for d in divs if batch // d >= 2]
    return max(pref) if pref else max(divs)


# ----------------------------- model wrapper ------------------------------- #

class ActorCriticPallas:
    def __init__(self, n_j, n_m, num_of_layers, use_learn_epsilon, input_dim,
                 hidden_dim, num_of_mlp_layers_for_feature_extract,
                 num_of_mlp_layers_actor, hidden_dim_actor,
                 num_of_mlp_layers_critic, hidden_dim_critic, key, batch_tile=8):
        # NOTE: hardcodes 2 linear layers per MLP (matches the num_of_mlp_layers_* == 2 config).
        # TODO(synk): eval-mode BatchNorm is folded to identity (valid at default init only);
        #             trained BN stats / a learned nonzero epsilon would need extra inputs.
        assert input_dim <= hidden_dim, "layer-0 padding assumes input_dim <= hidden_dim"
        self.n_j, self.n_m = n_j, n_m
        self.hidden_dim = hidden_dim
        self.hidden_dim_actor = hidden_dim_actor
        self.hidden_dim_critic = hidden_dim_critic
        self.eps = 0.0                                   # learnable epsilon initializes to 0
        self.num_gin_layers = num_of_layers - 1          # L2D GraphCNN loops range(num_layers-1)
        self.batch_tile = batch_tile

        def lin(k, din, dout):
            return (0.1 * jax.random.normal(k, (din, dout), jnp.float32),
                    jnp.zeros((1, dout), jnp.float32))

        keys = iter(jax.random.split(key, 64))
        self.gin_params = []
        din = input_dim
        for _ in range(self.num_gin_layers):
            w1, b1 = lin(next(keys), din, hidden_dim)
            w2, b2 = lin(next(keys), hidden_dim, hidden_dim)
            self.gin_params.append((w1, b1, w2, b2))
            din = hidden_dim

        # Actor MLP acts on concat([cand_feat(H), machine_feat(4), h_pooled(H)]); critic on h_pooled.
        self.aw1, self.ab1 = lin(next(keys), hidden_dim * 2 + 4, hidden_dim_actor)
        self.aw2, self.ab2 = lin(next(keys), hidden_dim_actor, 1)
        self.cw1, self.cb1 = lin(next(keys), hidden_dim, hidden_dim_critic)
        self.cw2, self.cb2 = lin(next(keys), hidden_dim_critic, 1)

        # ---- consolidated kernel-side weight buffers (4 refs instead of ~24) ----
        H, Ha, Hc = hidden_dim, hidden_dim_actor, hidden_dim_critic
        w_list, b_list = [], []
        for l, (w1, b1, w2, b2) in enumerate(self.gin_params):
            if l == 0:   # pad F_in -> H with zero rows (x is zero-padded to match -> exact)
                w1 = jnp.zeros((H, H), jnp.float32).at[:input_dim, :].set(w1)
            w_list += [w1, w2]
            b_list += [b1, b2]
        self.gin_w = jnp.stack(w_list)                                        # (2L, H, H)
        self.gin_b = jnp.stack(b_list)                                        # (2L, 1, H)

        # actor pack (Ha rows): [W1_cand^T | W1_mach^T | W1_pool^T | b1^T | w2 | b2-col]
        ab2_col = jnp.zeros((Ha, 1), jnp.float32).at[0, 0].set(self.ab2[0, 0])
        self.actor_pack = jnp.concatenate(
            [self.aw1.T, self.ab1.T, self.aw2, ab2_col], axis=1)              # (Ha, 2H+7)

        # critic pack (Hc cols): [W1 ; b1 ; w2^T ; b2-row]
        cb2_row = jnp.zeros((1, Hc), jnp.float32).at[0, 0].set(self.cb2[0, 0])
        self.critic_pack = jnp.concatenate(
            [self.cw1, self.cb1, self.cw2.T, cb2_row], axis=0)                # (H+3, Hc)

    def __call__(self, x, adj_matrix, graph_pool, candidate, mask, machine_feat):
        B, N, F_in = x.shape
        H, Ha, Hc = self.hidden_dim, self.hidden_dim_actor, self.hidden_dim_critic
        L = self.num_gin_layers
        JM = self.n_j * self.n_m
        LANE = ((JM + 1 + 127) // 128) * 128       # actions padded to lanes; lane JM carries v
        f32 = jnp.float32

        Bt = _choose_batch_tile(B, self.batch_tile)
        G = B // Bt

        # --- cheap, exact bookkeeping on the XLA side (no feature tensors materialized) ---
        x_pad = jnp.pad(x.astype(f32), ((0, 0), (0, 0), (0, H - F_in)))       # (B, N, H)
        # TODO(synk): torch.unique(candidate[:,:,0], dim=1) column-dedup has no clean kernel
        # equivalent; candidates are unique per job here, so a sort matches its sorted output.
        candidate_ops = jnp.sort(candidate[:, :, 0].astype(jnp.int32), axis=1)        # (B, n_j)
        cand_arr = jnp.repeat(candidate_ops, self.n_m, axis=1)                        # (B, JM)
        cand_arr = jnp.pad(cand_arr, ((0, 0), (0, LANE - JM))).reshape(B, 1, LANE)
        mask_row = jnp.pad(mask.reshape(B, JM).astype(f32), ((0, 0), (0, LANE - JM)),
                           constant_values=1.0).reshape(B, 1, LANE)           # pad lanes masked
        mach_t = jnp.pad(jnp.swapaxes(machine_feat.astype(f32), 1, 2),
                         ((0, 0), (0, 0), (0, LANE - JM)))                    # (B, 4, LANE)
        gp = graph_pool.astype(f32)
        adjf = adj_matrix.astype(f32)

        tensor_inputs = [adjf, x_pad, gp, cand_arr, mach_t, mask_row]
        tensor_specs = [
            pl.BlockSpec((Bt, N, N), lambda g: (g, 0, 0)),
            pl.BlockSpec((Bt, N, H), lambda g: (g, 0, 0)),
            pl.BlockSpec((Bt, 1, N), lambda g: (g, 0, 0)),
            pl.BlockSpec((Bt, 1, LANE), lambda g: (g, 0, 0)),
            pl.BlockSpec((Bt, 4, LANE), lambda g: (g, 0, 0)),
            pl.BlockSpec((Bt, 1, LANE), lambda g: (g, 0, 0)),
        ]
        weight_inputs = [self.gin_w, self.gin_b, self.actor_pack, self.critic_pack]
        weight_specs = [
            pl.BlockSpec(self.gin_w.shape, lambda g: (0, 0, 0)),
            pl.BlockSpec(self.gin_b.shape, lambda g: (0, 0, 0)),
            pl.BlockSpec(self.actor_pack.shape, lambda g: (0, 0)),
            pl.BlockSpec(self.critic_pack.shape, lambda g: (0, 0)),
        ]

        cost = pl.CostEstimate(
            flops=int(B * (L * (2 * N * N * H + 4 * N * H * H)
                           + 2 * N * H + 2 * H * Hc
                           + 2 * N * H * Ha + 2 * N * LANE * Ha + 8 * LANE * Ha
                           + 2 * H * Ha + 2 * Ha * LANE)),
            transcendentals=int(B * (Ha * LANE + LANE + Hc)),
            bytes_accessed=int(4 * (adjf.size + x_pad.size + gp.size + cand_arr.size
                                    + mach_t.size + mask_row.size + B * LANE)
                               + 4 * G * (self.gin_w.size + self.gin_b.size
                                          + self.actor_pack.size + self.critic_pack.size)),
        )

        kernel = _make_fused_kernel(L, self.eps, H, JM)
        out = pl.pallas_call(
            kernel,
            out_shape=jax.ShapeDtypeStruct((B, 1, LANE), f32),
            grid=(G,),
            in_specs=tensor_specs + weight_specs,
            out_specs=pl.BlockSpec((Bt, 1, LANE), lambda g: (g, 0, 0)),
            compiler_params=pltpu.CompilerParams(dimension_semantics=("parallel",)),
            cost_estimate=cost,
        )(*tensor_inputs, *weight_inputs)

        pi = out[:, 0, :JM][:, :, None]            # lane-dense packed row -> reference layout
        v = out[:, 0, JM:JM + 1]
        return pi, v


# ----------------------------- pure-JAX reference ------------------------------- #

def _reference_forward(model, x, adj, graph_pool, candidate, mask, machine_feat):
    B, N, _ = x.shape
    JM = model.n_j * model.n_m
    h = x.astype(jnp.float32)
    for (w1, b1, w2, b2) in model.gin_params:
        agg = jnp.einsum('bnm,bmd->bnd', adj, h) + (1.0 + model.eps) * h
        z = jnp.maximum(jnp.einsum('bnd,dh->bnh', agg, w1) + b1, 0.0)
        h = jnp.maximum(jnp.einsum('bnh,hk->bnk', z, w2) + b2, 0.0)
    h_pooled = jnp.einsum('bon,bnh->boh', graph_pool, h)[:, 0, :]                     # (B, H)
    candidate_ops = jnp.sort(candidate[:, :, 0].astype(jnp.int32), axis=1)
    cand_feat = jnp.take_along_axis(h, candidate_ops[:, :, None], axis=1)             # (B, n_j, H)
    cand_feat = jnp.repeat(cand_feat, model.n_m, axis=1)                              # (B, JM, H)
    concat = jnp.concatenate(
        [cand_feat, machine_feat.astype(jnp.float32),
         jnp.broadcast_to(h_pooled[:, None, :], (B, JM, model.hidden_dim))], axis=-1)
    ha = jnp.tanh(jnp.einsum('bjd,dh->bjh', concat, model.aw1) + model.ab1)
    s = jnp.einsum('bjh,ho->bjo', ha, model.aw2) + model.ab2
    s = jnp.where(mask.reshape(B, JM, 1), -jnp.inf, s)
    pi = jax.nn.softmax(s, axis=1)
    hc = jnp.tanh(h_pooled @ model.cw1 + model.cb1)
    v = hc @ model.cw2 + model.cb2
    return pi, v


# --------------------------------- main ------------------------------------ #

if __name__ == "__main__":
    n_j, n_m = 4, 2
    B = 4                   # -> batch tile Bt=2, grid=(2,): batched steps AND both v7x TCs busy
    N = n_j * n_m           # 8 operations
    JM = n_j * n_m          # 8 (job, machine) actions
    input_dim, hidden_dim = 4, 32

    key = jax.random.PRNGKey(0)
    k_model, kx, kadj, kmask, kmach = jax.random.split(key, 5)

    model = ActorCriticPallas(
        n_j=n_j, n_m=n_m, num_of_layers=3, use_learn_epsilon=False,
        input_dim=input_dim, hidden_dim=hidden_dim,
        num_of_mlp_layers_for_feature_extract=2,
        num_of_mlp_layers_actor=2, hidden_dim_actor=32,
        num_of_mlp_layers_critic=2, hidden_dim_critic=32,
        key=k_model,
    )

    x = jax.random.normal(kx, (B, N, input_dim), jnp.float32)
    adj = (jax.random.uniform(kadj, (B, N, N)) > 0.5).astype(jnp.float32)
    adj = jnp.minimum(adj + jnp.eye(N, dtype=jnp.float32)[None], 1.0)
    graph_pool = jnp.full((B, 1, N), 1.0 / N, jnp.float32)               # mean pooling
    cand_idx = jnp.arange(n_j, dtype=jnp.int32) * n_m                    # first op of each job
    candidate = jnp.broadcast_to(cand_idx[None, :, None], (B, n_j, 2)).astype(jnp.int32)
    mask = (jax.random.uniform(kmask, (B, JM)) > 0.7)
    mask = mask.at[:, 0].set(False)                                      # keep >=1 action legal
    machine_feat = jax.random.normal(kmach, (B, JM, 4), jnp.float32)

    pi, v = model(x, adj, graph_pool, candidate, mask, machine_feat)
    jax.block_until_ready((pi, v))
    assert pi.shape == (B, JM, 1) and v.shape == (B, 1)

    # correctness check vs. pure-JAX reference (loose tol: matmul precision may differ)
    with jax.default_matmul_precision("highest"):
        pi_want, v_want = _reference_forward(model, x, adj, graph_pool, candidate, mask,
                                             machine_feat)
    assert jnp.allclose(pi, pi_want, atol=1e-2, rtol=1e-2)
    assert jnp.allclose(v, v_want, atol=1e-2, rtol=1e-2)

    print("KERNEL_OK")
</pallas_src>

<mosaic_0001>
module attributes {stable_mosaic.version = 11 : i64} {
  func.func @kernel(%arg0: i32, %arg1: memref<2x8x8xf32, #tpu.memory_space<vmem>>, %arg2: memref<2x8x32xf32, #tpu.memory_space<vmem>>, %arg3: memref<2x1x8xf32, #tpu.memory_space<vmem>>, %arg4: memref<2x1x128xi32, #tpu.memory_space<vmem>>, %arg5: memref<2x4x128xf32, #tpu.memory_space<vmem>>, %arg6: memref<2x1x128xf32, #tpu.memory_space<vmem>>, %arg7: memref<4x32x32xf32, #tpu.memory_space<vmem>>, %arg8: memref<4x1x32xf32, #tpu.memory_space<vmem>>, %arg9: memref<32x71xf32, #tpu.memory_space<vmem>>, %arg10: memref<35x32xf32, #tpu.memory_space<vmem>>, %arg11: memref<2x1x128xf32, #tpu.memory_space<vmem>>) attributes {dimension_semantics = [#tpu.dimension_semantics<parallel>], iteration_bounds = array<i64: 2>, scalar_prefetch = 0 : i64, scratch_operands = 0 : i64, tpu.core_type = #tpu.core_type<tc>, window_params = [{transform_indices = @transform_0, window_bounds = array<i64: 2, 8, 8>}, {transform_indices = @transform_1, window_bounds = array<i64: 2, 8, 32>}, {transform_indices = @transform_2, window_bounds = array<i64: 2, 1, 8>}, {transform_indices = @transform_3, window_bounds = array<i64: 2, 1, 128>}, {transform_indices = @transform_4, window_bounds = array<i64: 2, 4, 128>}, {transform_indices = @transform_5, window_bounds = array<i64: 2, 1, 128>}, {pipeline_mode = #tpu.pipeline_mode<synchronous>, transform_indices = @transform_6, window_bounds = array<i64: 4, 32, 32>}, {pipeline_mode = #tpu.pipeline_mode<synchronous>, transform_indices = @transform_7, window_bounds = array<i64: 4, 1, 32>}, {pipeline_mode = #tpu.pipeline_mode<synchronous>, transform_indices = @transform_8, window_bounds = array<i64: 32, 71>}, {pipeline_mode = #tpu.pipeline_mode<synchronous>, transform_indices = @transform_9, window_bounds = array<i64: 35, 32>}, {transform_indices = @transform_10, window_bounds = array<i64: 2, 1, 128>}]} {
    %c0 = arith.constant 0 : index
    %c0_0 = arith.constant 0 : index
    %c0_1 = arith.constant 0 : index
    %0 = vector.load %arg1[%c0, %c0_0, %c0_1] : memref<2x8x8xf32, #tpu.memory_space<vmem>>, vector<2x8x8xf32>
    %c0_2 = arith.constant 0 : index
    %c0_3 = arith.constant 0 : index
    %c0_4 = arith.constant 0 : index
    %1 = vector.load %arg2[%c0_2, %c0_3, %c0_4] : memref<2x8x32xf32, #tpu.memory_space<vmem>>, vector<2x8x32xf32>
    %c0_5 = arith.constant 0 : index
    %c0_6 = arith.constant 0 : index
    %c0_7 = arith.constant 0 : index
    %2 = vector.load %arg7[%c0_5, %c0_6, %c0_7] : memref<4x32x32xf32, #tpu.memory_space<vmem>>, vector<1x32x32xf32>
    %3 = vector.shape_cast %2 : vector<1x32x32xf32> to vector<32x32xf32>
    %c0_8 = arith.constant 0 : index
    %c0_9 = arith.constant 0 : index
    %c0_10 = arith.constant 0 : index
    %4 = vector.load %arg8[%c0_8, %c0_9, %c0_10] : memref<4x1x32xf32, #tpu.memory_space<vmem>>, vector<1x1x32xf32>
    %5 = vector.shape_cast %4 : vector<1x1x32xf32> to vector<1x32xf32>
    %c1 = arith.constant 1 : index
    %c0_11 = arith.constant 0 : index
    %c0_12 = arith.constant 0 : index
    %6 = vector.load %arg7[%c1, %c0_11, %c0_12] : memref<4x32x32xf32, #tpu.memory_space<vmem>>, vector<1x32x32xf32>
    %7 = vector.shape_cast %6 : vector<1x32x32xf32> to vector<32x32xf32>
    %c1_13 = arith.constant 1 : index
    %c0_14 = arith.constant 0 : index
    %c0_15 = arith.constant 0 : index
    %8 = vector.load %arg8[%c1_13, %c0_14, %c0_15] : memref<4x1x32xf32, #tpu.memory_space<vmem>>, vector<1x1x32xf32>
    %9 = vector.shape_cast %8 : vector<1x1x32xf32> to vector<1x32xf32>
    "tpu.trace_start"() <{level = 10 : i32, message = "bij,bjh->bih"}> : () -> ()
    %cst = arith.constant dense<0.000000e+00> : vector<2x8x32xf32>
    %10 = tpu.matmul %0, %1, %cst {dimension_numbers = #tpu.dot_dimension_numbers<[2], [1], [1], [2], [0, 0, 0, 1, 1, 2], [0], [0]>} : vector<2x8x8xf32>, vector<2x8x32xf32>, vector<2x8x32xf32> -> vector<2x8x32xf32>
    "tpu.trace_stop"() : () -> ()
    %11 = arith.addf %10, %1 : vector<2x8x32xf32>
    %12 = vector.shape_cast %11 : vector<2x8x32xf32> to vector<16x32xf32>
    %cst_16 = arith.constant dense<0.000000e+00> : vector<16x32xf32>
    %13 = tpu.matmul %12, %3, %cst_16 {dimension_numbers = #tpu.dot_dimension_numbers<[1], [0], [0], [1], [0, 0, 1, 1], [], []>} : vector<16x32xf32>, vector<32x32xf32>, vector<16x32xf32> -> vector<16x32xf32>
    %14 = vector.broadcast %5 : vector<1x32xf32> to vector<16x32xf32>
    %15 = arith.addf %13, %14 : vector<16x32xf32>
    %cst_17 = arith.constant 0.000000e+00 : f32
    %16 = vector.broadcast %cst_17 : f32 to vector<16x32xf32>
    %17 = arith.maximumf %15, %16 : vector<16x32xf32>
    %cst_18 = arith.constant dense<0.000000e+00> : vector<16x32xf32>
    %18 = tpu.matmul %17, %7, %cst_18 {dimension_numbers = #tpu.dot_dimension_numbers<[1], [0], [0], [1], [0, 0, 1, 1], [], []>} : vector<16x32xf32>, vector<32x32xf32>, vector<16x32xf32> -> vector<16x32xf32>
    %19 = vector.broadcast %9 : vector<1x32xf32> to vector<16x32xf32>
    %20 = arith.addf %18, %19 : vector<16x32xf32>
    %cst_19 = arith.constant 0.000000e+00 : f32
    %21 = vector.broadcast %cst_19 : f32 to vector<16x32xf32>
    %22 = arith.maximumf %20, %21 : vector<16x32xf32>
    %23 = vector.shape_cast %22 : vector<16x32xf32> to vector<2x8x32xf32>
    %c2 = arith.constant 2 : index
    %c0_20 = arith.constant 0 : index
    %c0_21 = arith.constant 0 : index
    %24 = vector.load %arg7[%c2, %c0_20, %c0_21] : memref<4x32x32xf32, #tpu.memory_space<vmem>>, vector<1x32x32xf32>
    %25 = vector.shape_cast %24 : vector<1x32x32xf32> to vector<32x32xf32>
    %c2_22 = arith.constant 2 : index
    %c0_23 = arith.constant 0 : index
    %c0_24 = arith.constant 0 : index
    %26 = vector.load %arg8[%c2_22, %c0_23, %c0_24] : memref<4x1x32xf32, #tpu.memory_space<vmem>>, vector<1x1x32xf32>
    %27 = vector.shape_cast %26 : vector<1x1x32xf32> to vector<1x32xf32>
    %c3 = arith.constant 3 : index
    %c0_25 = arith.constant 0 : index
    %c0_26 = arith.constant 0 : index
    %28 = vector.load %arg7[%c3, %c0_25, %c0_26] : memref<4x32x32xf32, #tpu.memory_space<vmem>>, vector<1x32x32xf32>
    %29 = vector.shape_cast %28 : vector<1x32x32xf32> to vector<32x32xf32>
    %c3_27 = arith.constant 3 : index
    %c0_28 = arith.constant 0 : index
    %c0_29 = arith.constant 0 : index
    %30 = vector.load %arg8[%c3_27, %c0_28, %c0_29] : memref<4x1x32xf32, #tpu.memory_space<vmem>>, vector<1x1x32xf32>
    %31 = vector.shape_cast %30 : vector<1x1x32xf32> to vector<1x32xf32>
    "tpu.trace_start"() <{level = 10 : i32, message = "bij,bjh->bih"}> : () -> ()
    %cst_30 = arith.constant dense<0.000000e+00> : vector<2x8x32xf32>
    %32 = tpu.matmul %0, %23, %cst_30 {dimension_numbers = #tpu.dot_dimension_numbers<[2], [1], [1], [2], [0, 0, 0, 1, 1, 2], [0], [0]>} : vector<2x8x8xf32>, vector<2x8x32xf32>, vector<2x8x32xf32> -> vector<2x8x32xf32>
    "tpu.trace_stop"() : () -> ()
    %33 = arith.addf %32, %23 : vector<2x8x32xf32>
    %34 = vector.shape_cast %33 : vector<2x8x32xf32> to vector<16x32xf32>
    %cst_31 = arith.constant dense<0.000000e+00> : vector<16x32xf32>
    %35 = tpu.matmul %34, %25, %cst_31 {dimension_numbers = #tpu.dot_dimension_numbers<[1], [0], [0], [1], [0, 0, 1, 1], [], []>} : vector<16x32xf32>, vector<32x32xf32>, vector<16x32xf32> -> vector<16x32xf32>
    %36 = vector.broadcast %27 : vector<1x32xf32> to vector<16x32xf32>
    %37 = arith.addf %35, %36 : vector<16x32xf32>
    %cst_32 = arith.constant 0.000000e+00 : f32
    %38 = vector.broadcast %cst_32 : f32 to vector<16x32xf32>
    %39 = arith.maximumf %37, %38 : vector<16x32xf32>
    %cst_33 = arith.constant dense<0.000000e+00> : vector<16x32xf32>
    %40 = tpu.matmul %39, %29, %cst_33 {dimension_numbers = #tpu.dot_dimension_numbers<[1], [0], [0], [1], [0, 0, 1, 1], [], []>} : vector<16x32xf32>, vector<32x32xf32>, vector<16x32xf32> -> vector<16x32xf32>
    %41 = vector.broadcast %31 : vector<1x32xf32> to vector<16x32xf32>
    %42 = arith.addf %40, %41 : vector<16x32xf32>
    %cst_34 = arith.constant 0.000000e+00 : f32
    %43 = vector.broadcast %cst_34 : f32 to vector<16x32xf32>
    %44 = arith.maximumf %42, %43 : vector<16x32xf32>
    %45 = vector.shape_cast %44 : vector<16x32xf32> to vector<2x8x32xf32>
    %c0_35 = arith.constant 0 : index
    %c0_36 = arith.constant 0 : index
    %c0_37 = arith.constant 0 : index
    %46 = vector.load %arg3[%c0_35, %c0_36, %c0_37] : memref<2x1x8xf32, #tpu.memory_space<vmem>>, vector<2x1x8xf32>
    "tpu.trace_start"() <{level = 10 : i32, message = "bon,bnh->boh"}> : () -> ()
    %cst_38 = arith.constant dense<0.000000e+00> : vector<2x1x32xf32>
    %47 = tpu.matmul %46, %45, %cst_38 {dimension_numbers = #tpu.dot_dimension_numbers<[2], [1], [1], [2], [0, 0, 0, 1, 1, 2], [0], [0]>} : vector<2x1x8xf32>, vector<2x8x32xf32>, vector<2x1x32xf32> -> vector<2x1x32xf32>
    "tpu.trace_stop"() : () -> ()
    %48 = vector.shape_cast %47 : vector<2x1x32xf32> to vector<2x32xf32>
    %c0_39 = arith.constant 0 : index
    %c0_40 = arith.constant 0 : index
    %49 = vector.load %arg10[%c0_39, %c0_40] : memref<35x32xf32, #tpu.memory_space<vmem>>, vector<32x32xf32>
    %c32 = arith.constant 32 : index
    %c0_41 = arith.constant 0 : index
    %50 = vector.load %arg10[%c32, %c0_41] : memref<35x32xf32, #tpu.memory_space<vmem>>, vector<1x32xf32>
    %c33 = arith.constant 33 : index
    %c0_42 = arith.constant 0 : index
    %51 = vector.load %arg10[%c33, %c0_42] : memref<35x32xf32, #tpu.memory_space<vmem>>, vector<1x32xf32>
    %c34 = arith.constant 34 : index
    %c0_43 = arith.constant 0 : index
    %52 = vector.load %arg10[%c34, %c0_43] : memref<35x32xf32, #tpu.memory_space<vmem>>, vector<1x1xf32>
    %cst_44 = arith.constant dense<0.000000e+00> : vector<2x32xf32>
    %53 = tpu.matmul %48, %49, %cst_44 {dimension_numbers = #tpu.dot_dimension_numbers<[1], [0], [0], [1], [0, 0, 1, 1], [], []>} : vector<2x32xf32>, vector<32x32xf32>, vector<2x32xf32> -> vector<2x32xf32>
    %54 = vector.broadcast %50 : vector<1x32xf32> to vector<2x32xf32>
    %55 = arith.addf %53, %54 : vector<2x32xf32>
    %56 = math.tanh %55 : vector<2x32xf32>
    %57 = vector.broadcast %51 : vector<1x32xf32> to vector<2x32xf32>
    %58 = arith.mulf %56, %57 : vector<2x32xf32>
    %cst_45 = arith.constant dense<0.000000e+00> : vector<2xf32>
    %59 = vector.multi_reduction <add>, %58, %cst_45 [1] : vector<2x32xf32> to vector<2xf32>
    %60 = vector.shape_cast %59 : vector<2xf32> to vector<2x1xf32>
    %61 = vector.broadcast %52 : vector<1x1xf32> to vector<2x1xf32>
    %62 = arith.addf %60, %61 : vector<2x1xf32>
    %c0_46 = arith.constant 0 : index
    %c0_47 = arith.constant 0 : index
    %63 = vector.load %arg9[%c0_46, %c0_47] : memref<32x71xf32, #tpu.memory_space<vmem>>, vector<32x32xf32>
    %c0_48 = arith.constant 0 : index
    %c32_49 = arith.constant 32 : index
    %64 = vector.load %arg9[%c0_48, %c32_49] : memref<32x71xf32, #tpu.memory_space<vmem>>, vector<32x4xf32>
    %c0_50 = arith.constant 0 : index
    %c36 = arith.constant 36 : index
    %65 = vector.load %arg9[%c0_50, %c36] : memref<32x71xf32, #tpu.memory_space<vmem>>, vector<32x32xf32>
    %c0_51 = arith.constant 0 : index
    %c68 = arith.constant 68 : index
    %66 = vector.load %arg9[%c0_51, %c68] : memref<32x71xf32, #tpu.memory_space<vmem>>, vector<32x1xf32>
    %c0_52 = arith.constant 0 : index
    %c69 = arith.constant 69 : index
    %67 = vector.load %arg9[%c0_52, %c69] : memref<32x71xf32, #tpu.memory_space<vmem>>, vector<32x1xf32>
    %c0_53 = arith.constant 0 : index
    %c70 = arith.constant 70 : index
    %68 = vector.load %arg9[%c0_53, %c70] : memref<32x71xf32, #tpu.memory_space<vmem>>, vector<1x1xf32>
    %69 = tpu.iota {dimensions = array<i32: 1>} : vector<2x8x128xi32>
    %c0_54 = arith.constant 0 : index
    %c0_55 = arith.constant 0 : index
    %c0_56 = arith.constant 0 : index
    %70 = vector.load %arg4[%c0_54, %c0_55, %c0_56] : memref<2x1x128xi32, #tpu.memory_space<vmem>>, vector<2x1x128xi32>
    %71 = vector.broadcast %70 : vector<2x1x128xi32> to vector<2x8x128xi32>
    %72 = arith.cmpi eq, %69, %71 : vector<2x8x128xi32>
    %73 = arith.extui %72 : vector<2x8x128xi1> to vector<2x8x128xi32>
    %74 = arith.sitofp %73 : vector<2x8x128xi32> to vector<2x8x128xf32>
    %75 = vector.shape_cast %63 : vector<32x32xf32> to vector<1x32x32xf32>
    %76 = vector.broadcast %75 : vector<1x32x32xf32> to vector<2x32x32xf32>
    "tpu.trace_start"() <{level = 10 : i32, message = "bkh,bnh->bkn"}> : () -> ()
    %cst_57 = arith.constant dense<0.000000e+00> : vector<2x32x8xf32>
    %77 = tpu.matmul %76, %45, %cst_57 {dimension_numbers = #tpu.dot_dimension_numbers<[2], [2], [1], [1], [0, 0, 0, 1, 1, 1], [0], [0]>} : vector<2x32x32xf32>, vector<2x8x32xf32>, vector<2x32x8xf32> -> vector<2x32x8xf32>
    "tpu.trace_stop"() : () -> ()
    "tpu.trace_start"() <{level = 10 : i32, message = "bkn,bna->bka"}> : () -> ()
    %cst_58 = arith.constant dense<0.000000e+00> : vector<2x32x128xf32>
    %78 = tpu.matmul %77, %74, %cst_58 {dimension_numbers = #tpu.dot_dimension_numbers<[2], [1], [1], [2], [0, 0, 0, 1, 1, 2], [0], [0]>} : vector<2x32x8xf32>, vector<2x8x128xf32>, vector<2x32x128xf32> -> vector<2x32x128xf32>
    "tpu.trace_stop"() : () -> ()
    %79 = vector.shape_cast %64 : vector<32x4xf32> to vector<1x32x4xf32>
    %80 = vector.broadcast %79 : vector<1x32x4xf32> to vector<2x32x4xf32>
    %c0_59 = arith.constant 0 : index
    %c0_60 = arith.constant 0 : index
    %c0_61 = arith.constant 0 : index
    %81 = vector.load %arg5[%c0_59, %c0_60, %c0_61] : memref<2x4x128xf32, #tpu.memory_space<vmem>>, vector<2x4x128xf32>
    "tpu.trace_start"() <{level = 10 : i32, message = "bkf,bfa->bka"}> : () -> ()
    %cst_62 = arith.constant dense<0.000000e+00> : vector<2x32x128xf32>
    %82 = tpu.matmul %80, %81, %cst_62 {dimension_numbers = #tpu.dot_dimension_numbers<[2], [1], [1], [2], [0, 0, 0, 1, 1, 2], [0], [0]>} : vector<2x32x4xf32>, vector<2x4x128xf32>, vector<2x32x128xf32> -> vector<2x32x128xf32>
    "tpu.trace_stop"() : () -> ()
    %83 = vector.shape_cast %65 : vector<32x32xf32> to vector<1x32x32xf32>
    %84 = vector.broadcast %83 : vector<1x32x32xf32> to vector<2x32x32xf32>
    %85 = vector.broadcast %47 : vector<2x1x32xf32> to vector<2x32x32xf32>
    %86 = arith.mulf %84, %85 : vector<2x32x32xf32>
    %cst_63 = arith.constant dense<0.000000e+00> : vector<2x32xf32>
    %87 = vector.multi_reduction <add>, %86, %cst_63 [2] : vector<2x32x32xf32> to vector<2x32xf32>
    %88 = vector.shape_cast %87 : vector<2x32xf32> to vector<2x32x1xf32>
    %89 = arith.addf %78, %82 : vector<2x32x128xf32>
    %90 = vector.broadcast %88 : vector<2x32x1xf32> to vector<2x32x128xf32>
    %91 = arith.addf %89, %90 : vector<2x32x128xf32>
    %92 = vector.shape_cast %66 : vector<32x1xf32> to vector<1x32x1xf32>
    %93 = vector.broadcast %92 : vector<1x32x1xf32> to vector<2x32x128xf32>
    %94 = arith.addf %91, %93 : vector<2x32x128xf32>
    %95 = math.tanh %94 : vector<2x32x128xf32>
    %96 = vector.shape_cast %67 : vector<32x1xf32> to vector<1x32x1xf32>
    %97 = vector.broadcast %96 : vector<1x32x1xf32> to vector<2x32x128xf32>
    %98 = arith.mulf %95, %97 : vector<2x32x128xf32>
    %cst_64 = arith.constant dense<0.000000e+00> : vector<2x128xf32>
    %99 = vector.multi_reduction <add>, %98, %cst_64 [1] : vector<2x32x128xf32> to vector<2x128xf32>
    %100 = vector.shape_cast %99 : vector<2x128xf32> to vector<2x1x128xf32>
    %101 = vector.shape_cast %68 : vector<1x1xf32> to vector<1x1x1xf32>
    %102 = vector.broadcast %101 : vector<1x1x1xf32> to vector<2x1x128xf32>
    %103 = arith.addf %100, %102 : vector<2x1x128xf32>
    %c0_65 = arith.constant 0 : index
    %c0_66 = arith.constant 0 : index
    %c0_67 = arith.constant 0 : index
    %104 = vector.load %arg6[%c0_65, %c0_66, %c0_67] : memref<2x1x128xf32, #tpu.memory_space<vmem>>, vector<2x1x128xf32>
    %cst_68 = arith.constant 5.000000e-01 : f32
    %105 = vector.broadcast %cst_68 : f32 to vector<2x1x128xf32>
    %106 = arith.cmpf ogt, %104, %105 : vector<2x1x128xf32>
    %cst_69 = arith.constant -1.000000e+30 : f32
    %107 = vector.broadcast %cst_69 : f32 to vector<2x1x128xf32>
    %108 = arith.select %106, %107, %103 : vector<2x1x128xi1>, vector<2x1x128xf32>
    %cst_70 = arith.constant dense<0xFF800000> : vector<2x1xf32>
    %109 = vector.multi_reduction <maximumf>, %108, %cst_70 [2] : vector<2x1x128xf32> to vector<2x1xf32>
    %110 = vector.shape_cast %109 : vector<2x1xf32> to vector<2x1x1xf32>
    %111 = vector.broadcast %110 : vector<2x1x1xf32> to vector<2x1x128xf32>
    %112 = arith.subf %108, %111 : vector<2x1x128xf32>
    %113 = math.exp %112 : vector<2x1x128xf32>
    %cst_71 = arith.constant dense<0.000000e+00> : vector<2x1xf32>
    %114 = vector.multi_reduction <add>, %113, %cst_71 [2] : vector<2x1x128xf32> to vector<2x1xf32>
    %115 = vector.shape_cast %114 : vector<2x1xf32> to vector<2x1x1xf32>
    %116 = tpu.reciprocal %115 {approx = true} : vector<2x1x1xf32> -> vector<2x1x1xf32>
    %117 = vector.broadcast %116 : vector<2x1x1xf32> to vector<2x1x128xf32>
    %118 = arith.mulf %113, %117 : vector<2x1x128xf32>
    %119 = tpu.iota {dimensions = array<i32: 2>} : vector<2x1x128xi32>
    %c8_i32 = arith.constant 8 : i32
    %120 = vector.broadcast %c8_i32 : i32 to vector<2x1x128xi32>
    %121 = arith.cmpi eq, %119, %120 : vector<2x1x128xi32>
    %122 = vector.shape_cast %62 : vector<2x1xf32> to vector<2x1x1xf32>
    %123 = vector.shape_cast %122 : vector<2x1x1xf32> to vector<2x1x1xf32>
    %124 = vector.broadcast %123 : vector<2x1x1xf32> to vector<2x1x128xf32>
    %125 = arith.select %121, %124, %118 : vector<2x1x128xi1>, vector<2x1x128xf32>
    %c0_72 = arith.constant 0 : index
    %c0_73 = arith.constant 0 : index
    %c0_74 = arith.constant 0 : index
    %126 = vector.load %arg11[%c0_72, %c0_73, %c0_74] : memref<2x1x128xf32, #tpu.memory_space<vmem>>, vector<2x1x128xf32>
    tpu.vector_store %arg11[%c0_72, %c0_73, %c0_74], %125 {strides = array<i32>} : memref<2x1x128xf32, #tpu.memory_space<vmem>>, vector<2x1x128xf32>,
    return
  }
  func.func @transform_0(%arg0: i32) -> (i32, i32, i32) {
    %c0_i32 = arith.constant 0 : i32
    %c0_i32_0 = arith.constant 0 : i32
    %c0_i32_1 = arith.constant 0 : i32
    return %arg0, %c0_i32, %c0_i32_0 : i32, i32, i32
  }
  func.func @transform_1(%arg0: i32) -> (i32, i32, i32) {
    %c0_i32 = arith.constant 0 : i32
    %c0_i32_0 = arith.constant 0 : i32
    %c0_i32_1 = arith.constant 0 : i32
    return %arg0, %c0_i32, %c0_i32_0 : i32, i32, i32
  }
  func.func @transform_2(%arg0: i32) -> (i32, i32, i32) {
    %c0_i32 = arith.constant 0 : i32
    %c0_i32_0 = arith.constant 0 : i32
    %c0_i32_1 = arith.constant 0 : i32
    return %arg0, %c0_i32, %c0_i32_0 : i32, i32, i32
  }
  func.func @transform_3(%arg0: i32) -> (i32, i32, i32) {
    %c0_i32 = arith.constant 0 : i32
    %c0_i32_0 = arith.constant 0 : i32
    %c0_i32_1 = arith.constant 0 : i32
    return %arg0, %c0_i32, %c0_i32_0 : i32, i32, i32
  }
  func.func @transform_4(%arg0: i32) -> (i32, i32, i32) {
    %c0_i32 = arith.constant 0 : i32
    %c0_i32_0 = arith.constant 0 : i32
    %c0_i32_1 = arith.constant 0 : i32
    return %arg0, %c0_i32, %c0_i32_0 : i32, i32, i32
  }
  func.func @transform_5(%arg0: i32) -> (i32, i32, i32) {
    %c0_i32 = arith.constant 0 : i32
    %c0_i32_0 = arith.constant 0 : i32
    %c0_i32_1 = arith.constant 0 : i32
    return %arg0, %c0_i32, %c0_i32_0 : i32, i32, i32
  }
  func.func @transform_6(%arg0: i32) -> (i32, i32, i32) {
    %c0_i32 = arith.constant 0 : i32
    %c0_i32_0 = arith.constant 0 : i32
    %c0_i32_1 = arith.constant 0 : i32
    %c0_i32_2 = arith.constant 0 : i32
    return %c0_i32, %c0_i32_0, %c0_i32_1 : i32, i32, i32
  }
  func.func @transform_7(%arg0: i32) -> (i32, i32, i32) {
    %c0_i32 = arith.constant 0 : i32
    %c0_i32_0 = arith.constant 0 : i32
    %c0_i32_1 = arith.constant 0 : i32
    %c0_i32_2 = arith.constant 0 : i32
    return %c0_i32, %c0_i32_0, %c0_i32_1 : i32, i32, i32
  }
  func.func @transform_8(%arg0: i32) -> (i32, i32) {
    %c0_i32 = arith.constant 0 : i32
    %c0_i32_0 = arith.constant 0 : i32
    %c0_i32_1 = arith.constant 0 : i32
    return %c0_i32, %c0_i32_0 : i32, i32
  }
  func.func @transform_9(%arg0: i32) -> (i32, i32) {
    %c0_i32 = arith.constant 0 : i32
    %c0_i32_0 = arith.constant 0 : i32
    %c0_i32_1 = arith.constant 0 : i32
    return %c0_i32, %c0_i32_0 : i32, i32
  }
  func.func @transform_10(%arg0: i32) -> (i32, i32, i32) {
    %c0_i32 = arith.constant 0 : i32
    %c0_i32_0 = arith.constant 0 : i32
    %c0_i32_1 = arith.constant 0 : i32
    return %arg0, %c0_i32, %c0_i32_0 : i32, i32, i32
  }
}

</mosaic_0001>

<llo_original>
// kernel: tpu_custom_call.1
$region0: #{tpu_custom_call.1}
  #allocation0 [shape = 'u32[]', space=smem, size = 0x4, offset = 0x4, fixed_abs, tag = 'smem constant byte address 0x4 - core index']
  #allocation1 [shape = 'u32[144,128]{1,0:T(1,128)}', space=vmem, size = 0x12000, scoped, tag = 'internal scratch']
  %s0 = inlined_call_operand.vmem [shape: f32[4,8,8], index: 0, kind: input, shape index: {}]
  %s1 = inlined_call_operand.vmem [shape: f32[4,8,32], index: 1, kind: input, shape index: {}]
  %s2 = inlined_call_operand.hbm [shape: f32[4,1,8], index: 2, kind: input, shape index: {}]
  %s3 = inlined_call_operand.hbm [shape: s32[4,1,128], index: 3, kind: input, shape index: {}]
  %s4 = inlined_call_operand.hbm [shape: f32[4,4,128], index: 4, kind: input, shape index: {}]
  %s5 = inlined_call_operand.hbm [shape: f32[4,1,128], index: 5, kind: input, shape index: {}]
  %s6 = inlined_call_operand.hbm [shape: f32[4,32,32], index: 6, kind: input, shape index: {}]
  %s7 = inlined_call_operand.hbm [shape: f32[4,1,32], index: 7, kind: input, shape index: {}]
  %s8 = inlined_call_operand.vmem [shape: f32[32,71], index: 8, kind: input, shape index: {}]
  %s9 = inlined_call_operand.vmem [shape: f32[35,32], index: 9, kind: input, shape index: {}]
  %s10 = inlined_call_operand.hbm [shape: f32[4,1,128], index: 10, kind: output, shape index: {}]
  %s11 = sld [smem:[#allocation0]]
  $region97: #{tpu_custom_call.1} parent=0
    _
  %s13 = ssub.s32 1, %s11
  %s14 = scalar_select 0, %s13, %s11
  $region1: #{tpu_custom_call.1} parent=0
    #allocation2 [shape = 'u8[2048]{0}', space=vmem, size = 0x800, scoped, tag = 'input window, operand 2']
    #allocation3 [shape = 's32[2]{0}', space=sflag, size = 0x8, scoped, tag = 'scoped memory for tpu_custom_call.1']
    #allocation4 [shape = 's32[2]{0}', space=sflag, size = 0x8, scoped, tag = 'scoped memory for tpu_custom_call.1']
    #allocation5 [shape = 'u8[2048]{0}', space=vmem, size = 0x800, scoped, tag = 'input window, operand 3']
    #allocation6 [shape = 's32[2]{0}', space=sflag, size = 0x8, scoped, tag = 'scoped memory for tpu_custom_call.1']
    #allocation7 [shape = 'u8[8192]{0}', space=vmem, size = 0x2000, scoped, tag = 'input window, operand 4']
    #allocation8 [shape = 'u8[2048]{0}', space=vmem, size = 0x800, scoped, tag = 'input window, operand 5']
    #allocation9 [shape = 's32[2]{0}', space=sflag, size = 0x8, scoped, tag = 'scoped memory for tpu_custom_call.1']
    #allocation10 [shape = 'u8[65536]{0}', space=vmem, size = 0x10000, scoped, tag = 'input window, operand 6, single buffered']
    #allocation11 [shape = 'u8[2048]{0}', space=vmem, size = 0x800, scoped, tag = 'input window, operand 7, single buffered']
    #allocation12 [shape = 's32[1]{0}', space=sflag, size = 0x4, scoped, tag = 'scoped memory for tpu_custom_call.1']
    #allocation13 [shape = 'u8[2048]{0}', space=vmem, size = 0x800, scoped, tag = 'output window, operand 0']
    %15 = vsyncpa [#allocation3], 0
    %s16 = scalar_lea.sflag [#allocation3], 1
    %17 = vsyncpa %s16, 0
    %18 = vsyncpa [#allocation6], 0
    %s19 = scalar_lea.sflag [#allocation6], 1
    %20 = vsyncpa %s19, 0
    %21 = vsyncpa [#allocation9], 0
    %s22 = scalar_lea.sflag [#allocation9], 1
    %23 = vsyncpa %s22, 0
    %24 = vsyncpa [#allocation12], 0
    %25 = vsyncpa [#allocation4], 0
    %s26 = scalar_lea.sflag [#allocation4], 1
    %27 = vsyncpa %s26, 0
    loop: start=0, step=1, limit=4
    $region2: #{tpu_custom_call.1} parent=1 // loop_pre_header
      _
    $region3: #{tpu_custom_call.1} parent=1 // loop_header
      %s29 = sphi 0, %s33
      %p30 = scmp.ge.s32.totalorder %s29, 4
      %s39 = sphi 0, %s41
      %s42 = sphi 0, %s39
      %s43 = sphi 0, %s42
      %s59 = sphi 0, %s43
      %s65 = sphi 0, %s67
      %s68 = sphi 0, %s65
      %s69 = sphi 0, %s68
      %s85 = sphi 0, %s69
      %s91 = sphi 0, %s93
      %s94 = sphi 0, %s91
      %s95 = sphi 0, %s94
      %s111 = sphi 0, %s95
      %s117 = sphi 0, %s119
      %s120 = sphi 0, %s117
      %s121 = sphi 0, %s120
      %s137 = sphi 0, %s121
      %s143 = sphi 0, %s145
      %s146 = sphi 0, %s143
      %s147 = sphi 0, %s146
      %s163 = sphi 0, %s147
      %s169 = sphi 0, %s171
      %s172 = sphi 0, %s169
      %s173 = sphi 0, %s172
      %s189 = sphi 0, %s173
      %s193 = sphi 0, %s193
      %s195 = sphi 0, %s193
      %s196 = sphi 0, %s195
      %s210 = sphi 0, %s196
      %s214 = sphi 0, %s214
      %s216 = sphi 0, %s214
      %s217 = sphi 0, %s216
      %s231 = sphi 0, %s217
      %s235 = sphi 0, %s235
      %s237 = sphi 0, %s235
      %s238 = sphi 0, %s237
      %s252 = sphi 0, %s238
      %s256 = sphi 0, %s256
      %s258 = sphi 0, %s256
      %s259 = sphi 0, %s258
      %s273 = sphi 0, %s259
      %s279 = sphi 0, %s281
      %s282 = sphi 0, %s279
      %s283 = sphi 0, %s282
      %s299 = sphi 0, %s283
    $region4: #{tpu_custom_call.1} parent=1 // loop_header_branch
      %32 = sbr.rel (%p30) target = $region8
    $region5: #{tpu_custom_call.1} parent=1 // loop_body
      %s34 = ssub.s32 %s29, 1
      %s35 = ssub.s32 %s29, 2
      %s36 = sadd.s32 %s29, 1
      %s37 = ssub.s32 %s29, %s36
      %p38 = scmp.eq.s32.totalorder %s37, 0
      %s40 = sadd.s32 %s39, 1
      %s41 = scalar_select %p38, %s39, %s40
      %p44 = pneg %p38
      %p45 = scmp.eq.s32.totalorder %s29, 1
      %p46 = por %p44, %p45
      %p47 = scmp.ne.s32.totalorder %s39, %s42
      %p48 = scmp.eq.s32.totalorder %s29, 0
      %p49 = por %p47, %p48
      %p50 = scmp.ne.s32.totalorder %s39, %s42
      %p51 = scmp.eq.s32.totalorder %s34, 1
      %p52 = por %p50, %p51
      %p53 = scmp.ne.s32.totalorder %s42, %s43
      %p54 = scmp.eq.s32.totalorder %s34, 0
      %p55 = por %p53, %p54
      %p56 = scmp.ne.s32.totalorder %s42, %s43
      %p57 = scmp.eq.s32.totalorder %s35, 1
      %p58 = por %p56, %p57
      %p60 = scmp.ne.s32.totalorder %s43, %s59
      %p61 = scmp.eq.s32.totalorder %s35, 0
      %p62 = por %p60, %p61
      %s63 = ssub.s32 %s29, %s36
      %p64 = scmp.eq.s32.totalorder %s63, 0
      %s66 = sadd.s32 %s65, 1
      %s67 = scalar_select %p64, %s65, %s66
      %p70 = pneg %p64
      %p71 = scmp.eq.s32.totalorder %s29, 1
      %p72 = por %p70, %p71
      %p73 = scmp.ne.s32.totalorder %s65, %s68
      %p74 = scmp.eq.s32.totalorder %s29, 0
      %p75 = por %p73, %p74
      %p76 = scmp.ne.s32.totalorder %s65, %s68
      %p77 = scmp.eq.s32.totalorder %s34, 1
      %p78 = por %p76, %p77
      %p79 = scmp.ne.s32.totalorder %s68, %s69
      %p80 = scmp.eq.s32.totalorder %s34, 0
      %p81 = por %p79, %p80
      %p82 = scmp.ne.s32.totalorder %s68, %s69
      %p83 = scmp.eq.s32.totalorder %s35, 1
      %p84 = por %p82, %p83
      %p86 = scmp.ne.s32.totalorder %s69, %s85
      %p87 = scmp.eq.s32.totalorder %s35, 0
      %p88 = por %p86, %p87
      %s89 = ssub.s32 %s29, %s36
      %p90 = scmp.eq.s32.totalorder %s89, 0
      %s92 = sadd.s32 %s91, 1
      %s93 = scalar_select %p90, %s91, %s92
      %p96 = pneg %p90
      %p97 = scmp.eq.s32.totalorder %s29, 1
      %p98 = por %p96, %p97
      %p99 = scmp.ne.s32.totalorder %s91, %s94
      %p100 = scmp.eq.s32.totalorder %s29, 0
      %p101 = por %p99, %p100
      %p102 = scmp.ne.s32.totalorder %s91, %s94
      %p103 = scmp.eq.s32.totalorder %s34, 1
      %p104 = por %p102, %p103
      %p105 = scmp.ne.s32.totalorder %s94, %s95
      %p106 = scmp.eq.s32.totalorder %s34, 0
      %p107 = por %p105, %p106
      %p108 = scmp.ne.s32.totalorder %s94, %s95
      %p109 = scmp.eq.s32.totalorder %s35, 1
      %p110 = por %p108, %p109
      %p112 = scmp.ne.s32.totalorder %s95, %s111
      %p113 = scmp.eq.s32.totalorder %s35, 0
      %p114 = por %p112, %p113
      %s115 = ssub.s32 %s29, %s36
      %p116 = scmp.eq.s32.totalorder %s115, 0
      %s118 = sadd.s32 %s117, 1
      %s119 = scalar_select %p116, %s117, %s118
      %p122 = pneg %p116
      %p123 = scmp.eq.s32.totalorder %s29, 1
      %p124 = por %p122, %p123
      %p125 = scmp.ne.s32.totalorder %s117, %s120
      %p126 = scmp.eq.s32.totalorder %s29, 0
      %p127 = por %p125, %p126
      %p128 = scmp.ne.s32.totalorder %s117, %s120
      %p129 = scmp.eq.s32.totalorder %s34, 1
      %p130 = por %p128, %p129
      %p131 = scmp.ne.s32.totalorder %s120, %s121
      %p132 = scmp.eq.s32.totalorder %s34, 0
      %p133 = por %p131, %p132
      %p134 = scmp.ne.s32.totalorder %s120, %s121
      %p135 = scmp.eq.s32.totalorder %s35, 1
      %p136 = por %p134, %p135
      %p138 = scmp.ne.s32.totalorder %s121, %s137
      %p139 = scmp.eq.s32.totalorder %s35, 0
      %p140 = por %p138, %p139
      %s141 = ssub.s32 %s29, %s36
      %p142 = scmp.eq.s32.totalorder %s141, 0
      %s144 = sadd.s32 %s143, 1
      %s145 = scalar_select %p142, %s143, %s144
      %p148 = pneg %p142
      %p149 = scmp.eq.s32.totalorder %s29, 1
      %p150 = por %p148, %p149
      %p151 = scmp.ne.s32.totalorder %s143, %s146
      %p152 = scmp.eq.s32.totalorder %s29, 0
      %p153 = por %p151, %p152
      %p154 = scmp.ne.s32.totalorder %s143, %s146
      %p155 = scmp.eq.s32.totalorder %s34, 1
      %p156 = por %p154, %p155
      %p157 = scmp.ne.s32.totalorder %s146, %s147
      %p158 = scmp.eq.s32.totalorder %s34, 0
      %p159 = por %p157, %p158
      %p160 = scmp.ne.s32.totalorder %s146, %s147
      %p161 = scmp.eq.s32.totalorder %s35, 1
      %p162 = por %p160, %p161
      %p164 = scmp.ne.s32.totalorder %s147, %s163
      %p165 = scmp.eq.s32.totalorder %s35, 0
      %p166 = por %p164, %p165
      %s167 = ssub.s32 %s29, %s36
      %p168 = scmp.eq.s32.totalorder %s167, 0
      %s170 = sadd.s32 %s169, 1
      %s171 = scalar_select %p168, %s169, %s170
      %p174 = pneg %p168
      %p175 = scmp.eq.s32.totalorder %s29, 1
      %p176 = por %p174, %p175
      %p177 = scmp.ne.s32.totalorder %s169, %s172
      %p178 = scmp.eq.s32.totalorder %s29, 0
      %p179 = por %p177, %p178
      %p180 = scmp.ne.s32.totalorder %s169, %s172
      %p181 = scmp.eq.s32.totalorder %s34, 1
      %p182 = por %p180, %p181
      %p183 = scmp.ne.s32.totalorder %s172, %s173
      %p184 = scmp.eq.s32.totalorder %s34, 0
      %p185 = por %p183, %p184
      %p186 = scmp.ne.s32.totalorder %s172, %s173
      %p187 = scmp.eq.s32.totalorder %s35, 1
      %p188 = por %p186, %p187
      %p190 = scmp.ne.s32.totalorder %s173, %s189
      %p191 = scmp.eq.s32.totalorder %s35, 0
      %p192 = por %p190, %p191
      %s194 = sadd.s32 %s193, 1
      %p197 = scmp.eq.s32.totalorder %s29, 1
      %p198 = scmp.ne.s32.totalorder %s193, %s195
      %p199 = scmp.eq.s32.totalorder %s29, 0
      %p200 = por %p198, %p199
      %p201 = scmp.ne.s32.totalorder %s193, %s195
      %p202 = scmp.eq.s32.totalorder %s34, 1
      %p203 = por %p201, %p202
      %p204 = scmp.ne.s32.totalorder %s195, %s196
      %p205 = scmp.eq.s32.totalorder %s34, 0
      %p206 = por %p204, %p205
      %p207 = scmp.ne.s32.totalorder %s195, %s196
      %p208 = scmp.eq.s32.totalorder %s35, 1
      %p209 = por %p207, %p208
      %p211 = scmp.ne.s32.totalorder %s196, %s210
      %p212 = scmp.eq.s32.totalorder %s35, 0
      %p213 = por %p211, %p212
      %s215 = sadd.s32 %s214, 1
      %p218 = scmp.eq.s32.totalorder %s29, 1
      %p219 = scmp.ne.s32.totalorder %s214, %s216
      %p220 = scmp.eq.s32.totalorder %s29, 0
      %p221 = por %p219, %p220
      %p222 = scmp.ne.s32.totalorder %s214, %s216
      %p223 = scmp.eq.s32.totalorder %s34, 1
      %p224 = por %p222, %p223
      %p225 = scmp.ne.s32.totalorder %s216, %s217
      %p226 = scmp.eq.s32.totalorder %s34, 0
      %p227 = por %p225, %p226
      %p228 = scmp.ne.s32.totalorder %s216, %s217
      %p229 = scmp.eq.s32.totalorder %s35, 1
      %p230 = por %p228, %p229
      %p232 = scmp.ne.s32.totalorder %s217, %s231
      %p233 = scmp.eq.s32.totalorder %s35, 0
      %p234 = por %p232, %p233
      %s236 = sadd.s32 %s235, 1
      %p239 = scmp.eq.s32.totalorder %s29, 1
      %p240 = scmp.ne.s32.totalorder %s235, %s237
      %p241 = scmp.eq.s32.totalorder %s29, 0
      %p242 = por %p240, %p241
      %p243 = scmp.ne.s32.totalorder %s235, %s237
      %p244 = scmp.eq.s32.totalorder %s34, 1
      %p245 = por %p243, %p244
      %p246 = scmp.ne.s32.totalorder %s237, %s238
      %p247 = scmp.eq.s32.totalorder %s34, 0
      %p248 = por %p246, %p247
      %p249 = scmp.ne.s32.totalorder %s237, %s238
      %p250 = scmp.eq.s32.totalorder %s35, 1
      %p251 = por %p249, %p250
      %p253 = scmp.ne.s32.totalorder %s238, %s252
      %p254 = scmp.eq.s32.totalorder %s35, 0
      %p255 = por %p253, %p254
      %s257 = sadd.s32 %s256, 1
      %p260 = scmp.eq.s32.totalorder %s29, 1
      %p261 = scmp.ne.s32.totalorder %s256, %s258
      %p262 = scmp.eq.s32.totalorder %s29, 0
      %p263 = por %p261, %p262
      %p264 = scmp.ne.s32.totalorder %s256, %s258
      %p265 = scmp.eq.s32.totalorder %s34, 1
      %p266 = por %p264, %p265
      %p267 = scmp.ne.s32.totalorder %s258, %s259
      %p268 = scmp.eq.s32.totalorder %s34, 0
      %p269 = por %p267, %p268
      %p270 = scmp.ne.s32.totalorder %s258, %s259
      %p271 = scmp.eq.s32.totalorder %s35, 1
      %p272 = por %p270, %p271
      %p274 = scmp.ne.s32.totalorder %s259, %s273
      %p275 = scmp.eq.s32.totalorder %s35, 0
      %p276 = por %p274, %p275
      %s277 = ssub.s32 %s29, %s36
      %p278 = scmp.eq.s32.totalorder %s277, 0
      %s280 = sadd.s32 %s279, 1
      %s281 = scalar_select %p278, %s279, %s280
      %p284 = pneg %p278
      %p285 = scmp.eq.s32.totalorder %s29, 1
      %p286 = por %p284, %p285
      %p287 = scmp.ne.s32.totalorder %s279, %s282
      %p288 = scmp.eq.s32.totalorder %s29, 0
      %p289 = por %p287, %p288
      %p290 = scmp.ne.s32.totalorder %s279, %s282
      %p291 = scmp.eq.s32.totalorder %s34, 1
      %p292 = por %p290, %p291
      %p293 = scmp.ne.s32.totalorder %s282, %s283
      %p294 = scmp.eq.s32.totalorder %s34, 0
      %p295 = por %p293, %p294
      %p296 = scmp.ne.s32.totalorder %s282, %s283
      %p297 = scmp.eq.s32.totalorder %s35, 1
      %p298 = por %p296, %p297
      %p300 = scmp.ne.s32.totalorder %s283, %s299
      %p301 = scmp.eq.s32.totalorder %s35, 0
      %p302 = por %p300, %p301
      %p303 = scmp.le.s32.totalorder 1, %s29
      %p304 = scmp.lt.s32.totalorder %s29, 3
      %p305 = pnand %p303, %p304
      %p306 = pneg %p305
      // Predicated region
      $region9: #{tpu_custom_call.1} parent=5 // pred_check
        _
      $region10: #{tpu_custom_call.1} parent=5 // pred_check_branch
        %308 = sbr.rel (%p305) target = $region12
      $region11: #{tpu_custom_call.1} parent=5 // pred_region
        %s309 = ssub.s32 %s29, 1
        // Predicated region
        $region13: #{tpu_custom_call.1} parent=11 // pred_check
          %p310 = pneg %p206
        $region14: #{tpu_custom_call.1} parent=11 // pred_check_branch
          %312 = sbr.rel (%p310) target = $region16
        $region15: #{tpu_custom_call.1} parent=11 // pred_region
          %s314 = ssub.s32 2048, 2048
          %315 = vsyncadd [#allocation9], %s314
          %s316 = sshll.u32 [#allocation10], 4
          %s317 = int_to_ptr.vmem [resolvable:$true] %s316
          %322 = dma.hbm_to_vmem [thread:$0]  %s6, 2048, %s317, [#allocation9], 128, 128, 8
        $region16: #{tpu_custom_call.1} parent=11 // pred_fallthru
          _
        // Predicated region
        $region17: #{tpu_custom_call.1} parent=11 // pred_check
          %p323 = pneg %p227
        $region18: #{tpu_custom_call.1} parent=11 // pred_check_branch
          %325 = sbr.rel (%p323) target = $region20
        $region19: #{tpu_custom_call.1} parent=11 // pred_region
          %s327 = ssub.s32 64, 64
          %328 = vsyncadd [#allocation12], %s327
          %s329 = sshll.u32 [#allocation11], 4
          %s330 = int_to_ptr.vmem [resolvable:$true] %s329
          %335 = dma.hbm_to_vmem [thread:$0]  %s7, 64, %s330, [#allocation12], 16, 16, 1
        $region20: #{tpu_custom_call.1} parent=11 // pred_fallthru
          _
        // Predicated region
        $region21: #{tpu_custom_call.1} parent=11 // pred_check
          %p336 = pneg %p248
        $region22: #{tpu_custom_call.1} parent=11 // pred_check_branch
          %338 = sbr.rel (%p336) target = $region24
        $region23: #{tpu_custom_call.1} parent=11 // pred_region
          _
        $region24: #{tpu_custom_call.1} parent=11 // pred_fallthru
          _
        // Predicated region
        $region25: #{tpu_custom_call.1} parent=11 // pred_check
          %p339 = pneg %p269
        $region26: #{tpu_custom_call.1} parent=11 // pred_check_branch
          %341 = sbr.rel (%p339) target = $region28
        $region27: #{tpu_custom_call.1} parent=11 // pred_region
          _
        $region28: #{tpu_custom_call.1} parent=11 // pred_fallthru
          _
      $region12: #{tpu_custom_call.1} parent=5 // pred_fallthru
        _
      %p342 = scmp.lt.s32.totalorder %s29, 2
      // Predicated region
      $region29: #{tpu_custom_call.1} parent=5 // pred_check
        %p343 = pneg %p342
      $region30: #{tpu_custom_call.1} parent=5 // pred_check_branch
        %345 = sbr.rel (%p343) target = $region32
      $region31: #{tpu_custom_call.1} parent=5 // pred_region
        // Predicated region
        $region33: #{tpu_custom_call.1} parent=31 // pred_check
          %p346 = pneg %p49
        $region34: #{tpu_custom_call.1} parent=31 // pred_check_branch
          %348 = sbr.rel (%p346) target = $region36
        $region35: #{tpu_custom_call.1} parent=31 // pred_region
          %s349 = smul.u32 2, %s29
          %p350 = scmp.lt.s32.totalorder %s349, 3
          %s351 = scalar_select %p350, %s349, 3
          %s352 = smul.addr %s351, 8
          %s353 = scalar_lea.vmem %s0, %s352
          %s354 = smul.u32 2, %s29
        $region36: #{tpu_custom_call.1} parent=31 // pred_fallthru
          _
        // Predicated region
        $region37: #{tpu_custom_call.1} parent=31 // pred_check
          %p355 = pneg %p75
        $region38: #{tpu_custom_call.1} parent=31 // pred_check_branch
          %357 = sbr.rel (%p355) target = $region40
        $region39: #{tpu_custom_call.1} parent=31 // pred_region
          %s358 = smul.u32 2, %s29
          %p359 = scmp.lt.s32.totalorder %s358, 3
          %s360 = scalar_select %p359, %s358, 3
          %s361 = smul.addr %s360, 8
          %s362 = scalar_lea.vmem %s1, %s361
          %s363 = smul.u32 2, %s29
        $region40: #{tpu_custom_call.1} parent=31 // pred_fallthru
          _
        // Predicated region
        $region41: #{tpu_custom_call.1} parent=31 // pred_check
          %p364 = pneg %p101
        $region42: #{tpu_custom_call.1} parent=31 // pred_check_branch
          %366 = sbr.rel (%p364) target = $region44
        $region43: #{tpu_custom_call.1} parent=31 // pred_region
          %s367 = sand.u32 %s91, 1
          %s368 = scalar_lea.sflag [#allocation3], %s367
          %s369 = sand.u32 %s91, 1
          %s370 = smul.addr %s369, 2
          %s371 = scalar_lea.vmem [#allocation2], %s370
          %s372 = smul.u32 2, %s29
          %s374 = ssub.s32 32, 32
          %375 = vsyncadd %s368, %s374
          %s376 = smul.addr %s372, 16
          %s377 = scalar_lea.hbm %s2, %s376
          %s378 = sshll.u32 %s371, 4
          %s379 = int_to_ptr.vmem [resolvable:$true] %s378
          %384 = dma.hbm_to_vmem [thread:$0]  %s377, 32, %s379, %s368, 16, 16, 1
        $region44: #{tpu_custom_call.1} parent=31 // pred_fallthru
          _
        // Predicated region
        $region45: #{tpu_custom_call.1} parent=31 // pred_check
          %p385 = pneg %p127
        $region46: #{tpu_custom_call.1} parent=31 // pred_check_branch
          %387 = sbr.rel (%p385) target = $region48
        $region47: #{tpu_custom_call.1} parent=31 // pred_region
          %s388 = sand.u32 %s29, 1
          %s389 = scalar_lea.sflag [#allocation6], %s388
          %s390 = sand.u32 %s117, 1
          %s391 = smul.addr %s390, 2
          %s392 = scalar_lea.vmem [#allocation5], %s391
          %s393 = smul.u32 2, %s29
          %s395 = ssub.s32 32, 32
          %396 = vsyncadd %s389, %s395
          %s397 = smul.addr %s393, 16
          %s398 = scalar_lea.hbm %s3, %s397
          %s399 = sshll.u32 %s392, 4
          %s400 = int_to_ptr.vmem [resolvable:$true] %s399
          %405 = dma.hbm_to_vmem [thread:$0]  %s398, 32, %s400, %s389, 16, 16, 1
        $region48: #{tpu_custom_call.1} parent=31 // pred_fallthru
          _
        // Predicated region
        $region49: #{tpu_custom_call.1} parent=31 // pred_check
          %p406 = pneg %p153
        $region50: #{tpu_custom_call.1} parent=31 // pred_check_branch
          %408 = sbr.rel (%p406) target = $region52
        $region51: #{tpu_custom_call.1} parent=31 // pred_region
          %s409 = sand.u32 %s29, 1
          %s410 = scalar_lea.sflag [#allocation6], %s409
          %s411 = sand.u32 %s143, 1
          %s412 = smul.addr %s411, 8
          %s413 = scalar_lea.vmem [#allocation7], %s412
          %s414 = smul.u32 2, %s29
          %s416 = ssub.s32 128, 128
          %417 = vsyncadd %s410, %s416
          %s418 = smul.addr %s414, 64
          %s419 = scalar_lea.hbm %s4, %s418
          %s420 = sshll.u32 %s413, 4
          %s421 = int_to_ptr.vmem [resolvable:$true] %s420
          %426 = dma.hbm_to_vmem [thread:$0]  %s419, 128, %s421, %s410, 64, 64, 4
        $region52: #{tpu_custom_call.1} parent=31 // pred_fallthru
          _
        // Predicated region
        $region53: #{tpu_custom_call.1} parent=31 // pred_check
          %p427 = pneg %p179
        $region54: #{tpu_custom_call.1} parent=31 // pred_check_branch
          %429 = sbr.rel (%p427) target = $region56
        $region55: #{tpu_custom_call.1} parent=31 // pred_region
          %s430 = sand.u32 %s29, 1
          %s431 = scalar_lea.sflag [#allocation9], %s430
          %s432 = sand.u32 %s169, 1
          %s433 = smul.addr %s432, 2
          %s434 = scalar_lea.vmem [#allocation8], %s433
          %s435 = smul.u32 2, %s29
          %s437 = ssub.s32 32, 32
          %438 = vsyncadd %s431, %s437
          %s439 = smul.addr %s435, 16
          %s440 = scalar_lea.hbm %s5, %s439
          %s441 = sshll.u32 %s434, 4
          %s442 = int_to_ptr.vmem [resolvable:$true] %s441
          %447 = dma.hbm_to_vmem [thread:$0]  %s440, 32, %s442, %s431, 16, 16, 1
        $region56: #{tpu_custom_call.1} parent=31 // pred_fallthru
          _
      $region32: #{tpu_custom_call.1} parent=5 // pred_fallthru
        _
      %p448 = scmp.le.s32.totalorder 1, %s29
      %p449 = scmp.lt.s32.totalorder %s29, 3
      %p450 = pnand %p448, %p449
      %p451 = pneg %p450
      // Predicated region
      $region57: #{tpu_custom_call.1} parent=5 // pred_check
        _
      $region58: #{tpu_custom_call.1} parent=5 // pred_check_branch
        %453 = sbr.rel (%p450) target = $region60
      $region59: #{tpu_custom_call.1} parent=5 // pred_region
        %s454 = ssub.s32 %s29, 1
        %s455 = sand.u32 %s94, 1
        %s456 = scalar_lea.sflag [#allocation3], %s455
        %s457 = sand.u32 %s94, 1
        %s458 = smul.addr %s457, 2
        %s459 = scalar_lea.vmem [#allocation2], %s458
        // Predicated region
        $region61: #{tpu_custom_call.1} parent=59 // pred_check
          %p460 = pneg %p107
        $region62: #{tpu_custom_call.1} parent=59 // pred_check_branch
          %462 = sbr.rel (%p460) target = $region64
        $region63: #{tpu_custom_call.1} parent=59 // pred_region
          %463 = dma.done %s456, 32
        $region64: #{tpu_custom_call.1} parent=59 // pred_fallthru
          _
        %s464 = sand.u32 %s34, 1
        %s465 = scalar_lea.sflag [#allocation6], %s464
        %s466 = sand.u32 %s120, 1
        %s467 = smul.addr %s466, 2
        %s468 = scalar_lea.vmem [#allocation5], %s467
        // Predicated region
        $region65: #{tpu_custom_call.1} parent=59 // pred_check
          %p469 = pneg %p133
        $region66: #{tpu_custom_call.1} parent=59 // pred_check_branch
          %471 = sbr.rel (%p469) target = $region68
        $region67: #{tpu_custom_call.1} parent=59 // pred_region
          %472 = dma.done %s465, 32
        $region68: #{tpu_custom_call.1} parent=59 // pred_fallthru
          _
        %s473 = sand.u32 %s34, 1
        %s474 = scalar_lea.sflag [#allocation6], %s473
        %s475 = sand.u32 %s146, 1
        %s476 = smul.addr %s475, 8
        %s477 = scalar_lea.vmem [#allocation7], %s476
        // Predicated region
        $region69: #{tpu_custom_call.1} parent=59 // pred_check
          %p478 = pneg %p159
        $region70: #{tpu_custom_call.1} parent=59 // pred_check_branch
          %480 = sbr.rel (%p478) target = $region72
        $region71: #{tpu_custom_call.1} parent=59 // pred_region
          %481 = dma.done %s474, 128
        $region72: #{tpu_custom_call.1} parent=59 // pred_fallthru
          _
        %s482 = sand.u32 %s34, 1
        %s483 = scalar_lea.sflag [#allocation9], %s482
        %s484 = sand.u32 %s172, 1
        %s485 = smul.addr %s484, 2
        %s486 = scalar_lea.vmem [#allocation8], %s485
        // Predicated region
        $region73: #{tpu_custom_call.1} parent=59 // pred_check
          %p487 = pneg %p185
        $region74: #{tpu_custom_call.1} parent=59 // pred_check_branch
          %489 = sbr.rel (%p487) target = $region76
        $region75: #{tpu_custom_call.1} parent=59 // pred_region
          %490 = dma.done %s483, 32
        $region76: #{tpu_custom_call.1} parent=59 // pred_fallthru
          _
        // Predicated region
        $region77: #{tpu_custom_call.1} parent=59 // pred_check
          %p491 = pneg %p206
        $region78: #{tpu_custom_call.1} parent=59 // pred_check_branch
          %493 = sbr.rel (%p491) target = $region80
        $region79: #{tpu_custom_call.1} parent=59 // pred_region
          %494 = dma.done [#allocation9], 2048
        $region80: #{tpu_custom_call.1} parent=59 // pred_fallthru
          _
        // Predicated region
        $region81: #{tpu_custom_call.1} parent=59 // pred_check
          %p495 = pneg %p227
        $region82: #{tpu_custom_call.1} parent=59 // pred_check_branch
          %497 = sbr.rel (%p495) target = $region84
        $region83: #{tpu_custom_call.1} parent=59 // pred_region
          %498 = dma.done [#allocation12], 64
        $region84: #{tpu_custom_call.1} parent=59 // pred_fallthru
          _
        %s499 = smul.u32 2, %s34
        %p500 = scmp.lt.s32.totalorder %s499, 3
        %s501 = scalar_select %p500, %s499, 3
        %s502 = smul.addr %s501, 8
        %s503 = scalar_lea.vmem %s0, %s502
        %p504 = pneg %p55
        %p505 = pneg %p52
        %s506 = smul.u32 2, %s34
        %p507 = scmp.lt.s32.totalorder %s506, 3
        %s508 = scalar_select %p507, %s506, 3
        %s509 = smul.addr %s508, 8
        %s510 = scalar_lea.vmem %s1, %s509
        %p511 = pneg %p81
        %p512 = pneg %p78
        %s513 = sand.u32 %s94, 1
        %s514 = scalar_lea.sflag [#allocation3], %s513
        %s515 = sand.u32 %s94, 1
        %s516 = smul.addr %s515, 2
        %s517 = scalar_lea.vmem [#allocation2], %s516
        %p518 = pneg %p107
        %p519 = pneg %p104
        %s520 = sand.u32 %s34, 1
        %s521 = scalar_lea.sflag [#allocation6], %s520
        %s522 = sand.u32 %s120, 1
        %s523 = smul.addr %s522, 2
        %s524 = scalar_lea.vmem [#allocation5], %s523
        %p525 = pneg %p133
        %p526 = pneg %p130
        %s527 = sand.u32 %s34, 1
        %s528 = scalar_lea.sflag [#allocation6], %s527
        %s529 = sand.u32 %s146, 1
        %s530 = smul.addr %s529, 8
        %s531 = scalar_lea.vmem [#allocation7], %s530
        %p532 = pneg %p159
        %p533 = pneg %p156
        %s534 = sand.u32 %s34, 1
        %s535 = scalar_lea.sflag [#allocation9], %s534
        %s536 = sand.u32 %s172, 1
        %s537 = smul.addr %s536, 2
        %s538 = scalar_lea.vmem [#allocation8], %s537
        %p539 = pneg %p185
        %p540 = pneg %p182
        %p541 = pneg %p206
        %p542 = pneg %p203
        %p543 = pneg %p227
        %p544 = pneg %p224
        %p545 = pneg %p248
        %p546 = pneg %p245
        %p547 = pneg %p269
        %p548 = pneg %p266
        %p549 = pneg %p295
        %p550 = pneg %p292
        %s551 = sand.u32 %s282, 1
        %s552 = scalar_lea.sflag [#allocation4], %s551
        %s553 = sand.u32 %s282, 1
        %s554 = smul.addr %s553, 2
        %s555 = scalar_lea.vmem [#allocation13], %s554
        %s556 = smul.u32 2, %s34
        %p557 = scmp.lt.s32.totalorder %s556, 3
        %s558 = scalar_select %p557, %s556, 3
        %s559 = smul.addr %s558, 8
        %s560 = scalar_lea.vmem %s0, %s559
        %s561 = smul.u32 2, %s34
        %s562 = smul.u32 2, %s34
        %p563 = scmp.lt.s32.totalorder %s562, 3
        %s564 = scalar_select %p563, %s562, 3
        %s565 = smul.addr %s564, 8
        %s566 = scalar_lea.vmem %s1, %s565
        %s567 = smul.u32 2, %s34
        %s568 = smul.u32 2, %s34
        %s569 = smul.u32 2, %s34
        %s570 = smul.u32 2, %s34
        %s571 = smul.u32 2, %s34
        %s572 = smul.u32 2, %s34
        %v573 = vld [vmem:[%s560] sm:$0xff]
        %v574 = vld [vmem:[%s560 + $0x8] sm:$0xff]
        %v575 = vld [vmem:[%s566] sm:$0xff]
        %v576 = vld [vmem:[%s566 + $0x8] sm:$0xff]
        %v577 = vld [vmem:[#allocation10] sm:$0xff]
        %v578 = vld [vmem:[#allocation10 + $0x8] sm:$0xff]
        %v579 = vld [vmem:[#allocation10 + $0x10] sm:$0xff]
        %v580 = vld [vmem:[#allocation10 + $0x18] sm:$0xff]
        %v581 = vld [vmem:[#allocation11] sm:$0x1]
        %s582 = scalar_lea.vmem [#allocation10], 32
        %v583 = vld [vmem:[%s582] sm:$0xff]
        %v584 = vld [vmem:[%s582 + $0x8] sm:$0xff]
        %v585 = vld [vmem:[%s582 + $0x10] sm:$0xff]
        %v586 = vld [vmem:[%s582 + $0x18] sm:$0xff]
        %s587 = scalar_lea.vmem [#allocation11], 1
        %v588 = vld [vmem:[%s587] sm:$0x1]
        %vm589 = vcmask 64512
        %v591 = vsel %vm589, %v573, 0
        %593 = vmatprep.subr.mxu0 0.0
        %594 = vmatpush1.msra.mxu0 %v575
        %595 = vmatprep.subr.mxu0 0.0
        %596 = vmatpush1.msra.mxu0 0.0
        %597 = vmatprep.subr.mxu0 0.0
        %598 = vmatpush1.msra.mxu0 0.0
        %599 = vmatprep.subr.mxu0 0.0
        %600 = vmatpush1.msra.mxu0 0.0
        %601 = vmatprep.subr.mxu0 0.0
        %602 = vmatpush1.msra.mxu0 0.0
        %603 = vmatprep.subr.mxu0 0.0
        %604 = vmatpush1.msra.mxu0 0.0
        %605 = vmatprep.subr.mxu0 0.0
        %606 = vmatpush1.msra.mxu0 0.0
        %607 = vmatprep.subr.mxu0 0.0
        %608 = vmatpush1.msra.mxu0 0.0
        %609 = vmatprep.subr.mxu0 0.0
        %610 = vmatpush1.msra.mxu0 0.0
        %611 = vmatprep.subr.mxu0 0.0
        %612 = vmatpush1.msra.mxu0 0.0
        %613 = vmatprep.subr.mxu0 0.0
        %614 = vmatpush1.msra.mxu0 0.0
        %615 = vmatprep.subr.mxu0 0.0
        %616 = vmatpush1.msra.mxu0 0.0
        %617 = vmatprep.subr.mxu0 0.0
        %618 = vmatpush1.msra.mxu0 0.0
        %619 = vmatprep.subr.mxu0 0.0
        %620 = vmatpush1.msra.mxu0 0.0
        %621 = vmatprep.subr.mxu0 0.0
        %622 = vmatpush1.msra.mxu0 0.0
        %623 = vmatprep.subr.mxu0 0.0
        %624 = vmatpush1.msra.mxu0 0.0
        %625 = vmatprep.subr.mxu0 0.0
        %626 = vmatpush1.msra.mxu0 0.0
        %627 = vmatprep.subr.mxu0 0.0
        %628 = vmatpush1.msra.mxu0 0.0
        %629 = vmatprep.subr.mxu0 0.0
        %630 = vmatpush1.msra.mxu0 0.0
        %631 = vmatprep.subr.mxu0 0.0
        %632 = vmatpush1.msra.mxu0 0.0
        %633 = vmatprep.subr.mxu0 0.0
        %634 = vmatpush1.msra.mxu0 0.0
        %635 = vmatprep.subr.mxu0 0.0
        %636 = vmatpush1.msra.mxu0 0.0
        %637 = vmatprep.subr.mxu0 0.0
        %638 = vmatpush1.msra.mxu0 0.0
        %639 = vmatprep.subr.mxu0 0.0
        %640 = vmatpush1.msra.mxu0 0.0
        %641 = vmatprep.subr.mxu0 0.0
        %642 = vmatpush1.msra.mxu0 0.0
        %643 = vmatprep.subr.mxu0 0.0
        %644 = vmatpush1.msra.mxu0 0.0
        %645 = vmatprep.subr.mxu0 0.0
        %646 = vmatpush1.msra.mxu0 0.0
        %647 = vmatprep.subr.mxu0 0.0
        %648 = vmatpush1.msra.mxu0 0.0
        %649 = vmatprep.subr.mxu0 0.0
        %650 = vmatpush1.msra.mxu0 0.0
        %651 = vmatprep.subr.mxu0 0.0
        %652 = vmatpush1.msra.mxu0 0.0
        %653 = vmatprep.subr.mxu0 0.0
        %654 = vmatpush1.msra.mxu0 0.0
        %655 = vmatprep.subr.mxu0 0.0
        %656 = vmatpush1.msra.mxu0 0.0
        %657 = vmatprep.mubr.f32.mxu0 0.0
        %658 = vmatmul.mubr.f32.gmra.mrb[0].mxu0 %v591
        %v659 = vpop.f32.mrb[0].mxu0
        %v660 = vadd.f32 %v575, %v659
        %v661 = vpop.f32.mrb[0].mxu0
        %662 = vdwg.mxu0
        %v664 = vsel %vm589, %v574, 0
        %666 = vmatprep.subr.mxu0 0.0
        %667 = vmatpush1.msra.mxu0 %v576
        %668 = vmatprep.subr.mxu0 0.0
        %669 = vmatpush1.msra.mxu0 0.0
        %670 = vmatprep.subr.mxu0 0.0
        %671 = vmatpush1.msra.mxu0 0.0
        %672 = vmatprep.subr.mxu0 0.0
        %673 = vmatpush1.msra.mxu0 0.0
        %674 = vmatprep.subr.mxu0 0.0
        %675 = vmatpush1.msra.mxu0 0.0
        %676 = vmatprep.subr.mxu0 0.0
        %677 = vmatpush1.msra.mxu0 0.0
        %678 = vmatprep.subr.mxu0 0.0
        %679 = vmatpush1.msra.mxu0 0.0
        %680 = vmatprep.subr.mxu0 0.0
        %681 = vmatpush1.msra.mxu0 0.0
        %682 = vmatprep.subr.mxu0 0.0
        %683 = vmatpush1.msra.mxu0 0.0
        %684 = vmatprep.subr.mxu0 0.0
        %685 = vmatpush1.msra.mxu0 0.0
        %686 = vmatprep.subr.mxu0 0.0
        %687 = vmatpush1.msra.mxu0 0.0
        %688 = vmatprep.subr.mxu0 0.0
        %689 = vmatpush1.msra.mxu0 0.0
        %690 = vmatprep.subr.mxu0 0.0
        %691 = vmatpush1.msra.mxu0 0.0
        %692 = vmatprep.subr.mxu0 0.0
        %693 = vmatpush1.msra.mxu0 0.0
        %694 = vmatprep.subr.mxu0 0.0
        %695 = vmatpush1.msra.mxu0 0.0
        %696 = vmatprep.subr.mxu0 0.0
        %697 = vmatpush1.msra.mxu0 0.0
        %698 = vmatprep.subr.mxu0 0.0
        %699 = vmatpush1.msra.mxu0 0.0
        %700 = vmatprep.subr.mxu0 0.0
        %701 = vmatpush1.msra.mxu0 0.0
        %702 = vmatprep.subr.mxu0 0.0
        %703 = vmatpush1.msra.mxu0 0.0
        %704 = vmatprep.subr.mxu0 0.0
        %705 = vmatpush1.msra.mxu0 0.0
        %706 = vmatprep.subr.mxu0 0.0
        %707 = vmatpush1.msra.mxu0 0.0
        %708 = vmatprep.subr.mxu0 0.0
        %709 = vmatpush1.msra.mxu0 0.0
        %710 = vmatprep.subr.mxu0 0.0
        %711 = vmatpush1.msra.mxu0 0.0
        %712 = vmatprep.subr.mxu0 0.0
        %713 = vmatpush1.msra.mxu0 0.0
        %714 = vmatprep.subr.mxu0 0.0
        %715 = vmatpush1.msra.mxu0 0.0
        %716 = vmatprep.subr.mxu0 0.0
        %717 = vmatpush1.msra.mxu0 0.0
        %718 = vmatprep.subr.mxu0 0.0
        %719 = vmatpush1.msra.mxu0 0.0
        %720 = vmatprep.subr.mxu0 0.0
        %721 = vmatpush1.msra.mxu0 0.0
        %722 = vmatprep.subr.mxu0 0.0
        %723 = vmatpush1.msra.mxu0 0.0
        %724 = vmatprep.subr.mxu0 0.0
        %725 = vmatpush1.msra.mxu0 0.0
        %726 = vmatprep.subr.mxu0 0.0
        %727 = vmatpush1.msra.mxu0 0.0
        %728 = vmatprep.subr.mxu0 0.0
        %729 = vmatpush1.msra.mxu0 0.0
        %730 = vmatprep.mubr.f32.mxu0 0.0
        %731 = vmatmul.mubr.f32.gmra.mrb[0].mxu0 %v664
        %v732 = vpop.f32.mrb[0].mxu0
        %v733 = vadd.f32 %v576, %v732
        %v734 = vpop.f32.mrb[0].mxu0
        %735 = vdwg.mxu0
        %v737 = vlaneseq
        %v738 = vshrl.u32 %v737, 7
        %v739 = vsub.s32 0, %v738
        %v740 = vrot.slane %v581, %v739
        %vm742 = vcmask 261120
        %v744 = vsel %vm742, %v660, 0
        %v747 = vsel %vm742, %v733, 0
        %749 = vmatprep.subr.mxu0 0.0
        %750 = vmatpush1.msra.mxu0 %v577
        %751 = vmatprep.subr.mxu0 0.0
        %752 = vmatpush1.msra.mxu0 %v578
        %753 = vmatprep.subr.mxu0 0.0
        %754 = vmatpush1.msra.mxu0 %v579
        %755 = vmatprep.subr.mxu0 0.0
        %756 = vmatpush1.msra.mxu0 %v580
        %757 = vmatprep.subr.mxu0 0.0
        %758 = vmatpush1.msra.mxu0 0.0
        %759 = vmatprep.subr.mxu0 0.0
        %760 = vmatpush1.msra.mxu0 0.0
        %761 = vmatprep.subr.mxu0 0.0
        %762 = vmatpush1.msra.mxu0 0.0
        %763 = vmatprep.subr.mxu0 0.0
        %764 = vmatpush1.msra.mxu0 0.0
        %765 = vmatprep.subr.mxu0 0.0
        %766 = vmatpush1.msra.mxu0 0.0
        %767 = vmatprep.subr.mxu0 0.0
        %768 = vmatpush1.msra.mxu0 0.0
        %769 = vmatprep.subr.mxu0 0.0
        %770 = vmatpush1.msra.mxu0 0.0
        %771 = vmatprep.subr.mxu0 0.0
        %772 = vmatpush1.msra.mxu0 0.0
        %773 = vmatprep.subr.mxu0 0.0
        %774 = vmatpush1.msra.mxu0 0.0
        %775 = vmatprep.subr.mxu0 0.0
        %776 = vmatpush1.msra.mxu0 0.0
        %777 = vmatprep.subr.mxu0 0.0
        %778 = vmatpush1.msra.mxu0 0.0
        %779 = vmatprep.subr.mxu0 0.0
        %780 = vmatpush1.msra.mxu0 0.0
        %781 = vmatprep.subr.mxu0 0.0
        %782 = vmatpush1.msra.mxu0 0.0
        %783 = vmatprep.subr.mxu0 0.0
        %784 = vmatpush1.msra.mxu0 0.0
        %785 = vmatprep.subr.mxu0 0.0
        %786 = vmatpush1.msra.mxu0 0.0
        %787 = vmatprep.subr.mxu0 0.0
        %788 = vmatpush1.msra.mxu0 0.0
        %789 = vmatprep.subr.mxu0 0.0
        %790 = vmatpush1.msra.mxu0 0.0
        %791 = vmatprep.subr.mxu0 0.0
        %792 = vmatpush1.msra.mxu0 0.0
        %793 = vmatprep.subr.mxu0 0.0
        %794 = vmatpush1.msra.mxu0 0.0
        %795 = vmatprep.subr.mxu0 0.0
        %796 = vmatpush1.msra.mxu0 0.0
        %797 = vmatprep.subr.mxu0 0.0
        %798 = vmatpush1.msra.mxu0 0.0
        %799 = vmatprep.subr.mxu0 0.0
        %800 = vmatpush1.msra.mxu0 0.0
        %801 = vmatprep.subr.mxu0 0.0
        %802 = vmatpush1.msra.mxu0 0.0
        %803 = vmatprep.subr.mxu0 0.0
        %804 = vmatpush1.msra.mxu0 0.0
        %805 = vmatprep.subr.mxu0 0.0
        %806 = vmatpush1.msra.mxu0 0.0
        %807 = vmatprep.subr.mxu0 0.0
        %808 = vmatpush1.msra.mxu0 0.0
        %809 = vmatprep.subr.mxu0 0.0
        %810 = vmatpush1.msra.mxu0 0.0
        %811 = vmatprep.subr.mxu0 0.0
        %812 = vmatpush1.msra.mxu0 0.0
        %813 = vmatprep.mubr.f32.mxu0 0.0
        %814 = vmatmul.mubr.f32.gmra.mrb[0].mxu0 %v744
        %v815 = vpop.f32.mrb[0].mxu0
        %v816 = vadd.f32 %v740, %v815
        %v817 = vpop.f32.mrb[0].mxu0
        %818 = vmatprep.mubr.f32.mxu0 0.0
        %819 = vmatmul.mubr.f32.gmra.mrb[0].mxu0 %v747
        %v820 = vpop.f32.mrb[0].mxu0
        %v821 = vadd.f32 %v740, %v820
        %v822 = vpop.f32.mrb[0].mxu0
        %823 = vdwg.mxu0
        %v824 = vmax.f32 %v816, 0.0
        %v825 = vmax.f32 %v821, 0.0
        %v827 = vlaneseq
        %v828 = vshrl.u32 %v827, 7
        %v829 = vsub.s32 0, %v828
        %v830 = vrot.slane %v588, %v829
        %v833 = vsel %vm742, %v824, 0
        %v836 = vsel %vm742, %v825, 0
        %838 = vmatprep.subr.mxu0 0.0
        %839 = vmatpush1.msra.mxu0 %v583
        %840 = vmatprep.subr.mxu0 0.0
        %841 = vmatpush1.msra.mxu0 %v584
        %842 = vmatprep.subr.mxu0 0.0
        %843 = vmatpush1.msra.mxu0 %v585
        %844 = vmatprep.subr.mxu0 0.0
        %845 = vmatpush1.msra.mxu0 %v586
        %846 = vmatprep.subr.mxu0 0.0
        %847 = vmatpush1.msra.mxu0 0.0
        %848 = vmatprep.subr.mxu0 0.0
        %849 = vmatpush1.msra.mxu0 0.0
        %850 = vmatprep.subr.mxu0 0.0
        %851 = vmatpush1.msra.mxu0 0.0
        %852 = vmatprep.subr.mxu0 0.0
        %853 = vmatpush1.msra.mxu0 0.0
        %854 = vmatprep.subr.mxu0 0.0
        %855 = vmatpush1.msra.mxu0 0.0
        %856 = vmatprep.subr.mxu0 0.0
        %857 = vmatpush1.msra.mxu0 0.0
        %858 = vmatprep.subr.mxu0 0.0
        %859 = vmatpush1.msra.mxu0 0.0
        %860 = vmatprep.subr.mxu0 0.0
        %861 = vmatpush1.msra.mxu0 0.0
        %862 = vmatprep.subr.mxu0 0.0
        %863 = vmatpush1.msra.mxu0 0.0
        %864 = vmatprep.subr.mxu0 0.0
        %865 = vmatpush1.msra.mxu0 0.0
        %866 = vmatprep.subr.mxu0 0.0
        %867 = vmatpush1.msra.mxu0 0.0
        %868 = vmatprep.subr.mxu0 0.0
        %869 = vmatpush1.msra.mxu0 0.0
        %870 = vmatprep.subr.mxu0 0.0
        %871 = vmatpush1.msra.mxu0 0.0
        %872 = vmatprep.subr.mxu0 0.0
        %873 = vmatpush1.msra.mxu0 0.0
        %874 = vmatprep.subr.mxu0 0.0
        %875 = vmatpush1.msra.mxu0 0.0
        %876 = vmatprep.subr.mxu0 0.0
        %877 = vmatpush1.msra.mxu0 0.0
        %878 = vmatprep.subr.mxu0 0.0
        %879 = vmatpush1.msra.mxu0 0.0
        %880 = vmatprep.subr.mxu0 0.0
        %881 = vmatpush1.msra.mxu0 0.0
        %882 = vmatprep.subr.mxu0 0.0
        %883 = vmatpush1.msra.mxu0 0.0
        %884 = vmatprep.subr.mxu0 0.0
        %885 = vmatpush1.msra.mxu0 0.0
        %886 = vmatprep.subr.mxu0 0.0
        %887 = vmatpush1.msra.mxu0 0.0
        %888 = vmatprep.subr.mxu0 0.0
        %889 = vmatpush1.msra.mxu0 0.0
        %890 = vmatprep.subr.mxu0 0.0
        %891 = vmatpush1.msra.mxu0 0.0
        %892 = vmatprep.subr.mxu0 0.0
        %893 = vmatpush1.msra.mxu0 0.0
        %894 = vmatprep.subr.mxu0 0.0
        %895 = vmatpush1.msra.mxu0 0.0
        %896 = vmatprep.subr.mxu0 0.0
        %897 = vmatpush1.msra.mxu0 0.0
        %898 = vmatprep.subr.mxu0 0.0
        %899 = vmatpush1.msra.mxu0 0.0
        %900 = vmatprep.subr.mxu0 0.0
        %901 = vmatpush1.msra.mxu0 0.0
        %902 = vmatprep.mubr.f32.mxu0 0.0
        %903 = vmatmul.mubr.f32.gmra.mrb[0].mxu0 %v833
        %v904 = vpop.f32.mrb[0].mxu0
        %v905 = vadd.f32 %v830, %v904
        %v906 = vpop.f32.mrb[0].mxu0
        %907 = vmatprep.mubr.f32.mxu0 0.0
        %908 = vmatmul.mubr.f32.gmra.mrb[0].mxu0 %v836
        %v909 = vpop.f32.mrb[0].mxu0
        %v910 = vadd.f32 %v830, %v909
        %v911 = vpop.f32.mrb[0].mxu0
        %912 = vdwg.mxu0
        %v913 = vmax.f32 %v905, 0.0
        %v914 = vmax.f32 %v910, 0.0
        %s915 = scalar_lea.vmem [#allocation10], 64
        %v916 = vld [vmem:[%s915] sm:$0xff]
        %v917 = vld [vmem:[%s915 + $0x8] sm:$0xff]
        %v918 = vld [vmem:[%s915 + $0x10] sm:$0xff]
        %v919 = vld [vmem:[%s915 + $0x18] sm:$0xff]
        %s920 = scalar_lea.vmem [#allocation11], 2
        %v921 = vld [vmem:[%s920] sm:$0x1]
        %s922 = scalar_lea.vmem [#allocation10], 96
        %v923 = vld [vmem:[%s922] sm:$0xff]
        %v924 = vld [vmem:[%s922 + $0x8] sm:$0xff]
        %v925 = vld [vmem:[%s922 + $0x10] sm:$0xff]
        %v926 = vld [vmem:[%s922 + $0x18] sm:$0xff]
        %s927 = scalar_lea.vmem [#allocation11], 3
        %v928 = vld [vmem:[%s927] sm:$0x1]
        %929 = vmatprep.subr.mxu0 0.0
        %930 = vmatpush1.msra.mxu0 %v913
        %931 = vmatprep.subr.mxu0 0.0
        %932 = vmatpush1.msra.mxu0 0.0
        %933 = vmatprep.subr.mxu0 0.0
        %934 = vmatpush1.msra.mxu0 0.0
        %935 = vmatprep.subr.mxu0 0.0
        %936 = vmatpush1.msra.mxu0 0.0
        %937 = vmatprep.subr.mxu0 0.0
        %938 = vmatpush1.msra.mxu0 0.0
        %939 = vmatprep.subr.mxu0 0.0
        %940 = vmatpush1.msra.mxu0 0.0
        %941 = vmatprep.subr.mxu0 0.0
        %942 = vmatpush1.msra.mxu0 0.0
        %943 = vmatprep.subr.mxu0 0.0
        %944 = vmatpush1.msra.mxu0 0.0
        %945 = vmatprep.subr.mxu0 0.0
        %946 = vmatpush1.msra.mxu0 0.0
        %947 = vmatprep.subr.mxu0 0.0
        %948 = vmatpush1.msra.mxu0 0.0
        %949 = vmatprep.subr.mxu0 0.0
        %950 = vmatpush1.msra.mxu0 0.0
        %951 = vmatprep.subr.mxu0 0.0
        %952 = vmatpush1.msra.mxu0 0.0
        %953 = vmatprep.subr.mxu0 0.0
        %954 = vmatpush1.msra.mxu0 0.0
        %955 = vmatprep.subr.mxu0 0.0
        %956 = vmatpush1.msra.mxu0 0.0
        %957 = vmatprep.subr.mxu0 0.0
        %958 = vmatpush1.msra.mxu0 0.0
        %959 = vmatprep.subr.mxu0 0.0
        %960 = vmatpush1.msra.mxu0 0.0
        %961 = vmatprep.subr.mxu0 0.0
        %962 = vmatpush1.msra.mxu0 0.0
        %963 = vmatprep.subr.mxu0 0.0
        %964 = vmatpush1.msra.mxu0 0.0
        %965 = vmatprep.subr.mxu0 0.0
        %966 = vmatpush1.msra.mxu0 0.0
        %967 = vmatprep.subr.mxu0 0.0
        %968 = vmatpush1.msra.mxu0 0.0
        %969 = vmatprep.subr.mxu0 0.0
        %970 = vmatpush1.msra.mxu0 0.0
        %971 = vmatprep.subr.mxu0 0.0
        %972 = vmatpush1.msra.mxu0 0.0
        %973 = vmatprep.subr.mxu0 0.0
        %974 = vmatpush1.msra.mxu0 0.0
        %975 = vmatprep.subr.mxu0 0.0
        %976 = vmatpush1.msra.mxu0 0.0
        %977 = vmatprep.subr.mxu0 0.0
        %978 = vmatpush1.msra.mxu0 0.0
        %979 = vmatprep.subr.mxu0 0.0
        %980 = vmatpush1.msra.mxu0 0.0
        %981 = vmatprep.subr.mxu0 0.0
        %982 = vmatpush1.msra.mxu0 0.0
        %983 = vmatprep.subr.mxu0 0.0
        %984 = vmatpush1.msra.mxu0 0.0
        %985 = vmatprep.subr.mxu0 0.0
        %986 = vmatpush1.msra.mxu0 0.0
        %987 = vmatprep.subr.mxu0 0.0
        %988 = vmatpush1.msra.mxu0 0.0
        %989 = vmatprep.subr.mxu0 0.0
        %990 = vmatpush1.msra.mxu0 0.0
        %991 = vmatprep.subr.mxu0 0.0
        %992 = vmatpush1.msra.mxu0 0.0
        %993 = vmatprep.mubr.f32.mxu0 0.0
        %994 = vmatmul.mubr.f32.gmra.mrb[0].mxu0 %v591
        %v995 = vpop.f32.mrb[0].mxu0
        %v996 = vadd.f32 %v913, %v995
        %v997 = vpop.f32.mrb[0].mxu0
        %998 = vdwg.mxu0
        %999 = vmatprep.subr.mxu0 0.0
        %1000 = vmatpush1.msra.mxu0 %v914
        %1001 = vmatprep.subr.mxu0 0.0
        %1002 = vmatpush1.msra.mxu0 0.0
        %1003 = vmatprep.subr.mxu0 0.0
        %1004 = vmatpush1.msra.mxu0 0.0
        %1005 = vmatprep.subr.mxu0 0.0
        %1006 = vmatpush1.msra.mxu0 0.0
        %1007 = vmatprep.subr.mxu0 0.0
        %1008 = vmatpush1.msra.mxu0 0.0
        %1009 = vmatprep.subr.mxu0 0.0
        %1010 = vmatpush1.msra.mxu0 0.0
        %1011 = vmatprep.subr.mxu0 0.0
        %1012 = vmatpush1.msra.mxu0 0.0
        %1013 = vmatprep.subr.mxu0 0.0
        %1014 = vmatpush1.msra.mxu0 0.0
        %1015 = vmatprep.subr.mxu0 0.0
        %1016 = vmatpush1.msra.mxu0 0.0
        %1017 = vmatprep.subr.mxu0 0.0
        %1018 = vmatpush1.msra.mxu0 0.0
        %1019 = vmatprep.subr.mxu0 0.0
        %1020 = vmatpush1.msra.mxu0 0.0
        %1021 = vmatprep.subr.mxu0 0.0
        %1022 = vmatpush1.msra.mxu0 0.0
        %1023 = vmatprep.subr.mxu0 0.0
        %1024 = vmatpush1.msra.mxu0 0.0
        %1025 = vmatprep.subr.mxu0 0.0
        %1026 = vmatpush1.msra.mxu0 0.0
        %1027 = vmatprep.subr.mxu0 0.0
        %1028 = vmatpush1.msra.mxu0 0.0
        %1029 = vmatprep.subr.mxu0 0.0
        %1030 = vmatpush1.msra.mxu0 0.0
        %1031 = vmatprep.subr.mxu0 0.0
        %1032 = vmatpush1.msra.mxu0 0.0
        %1033 = vmatprep.subr.mxu0 0.0
        %1034 = vmatpush1.msra.mxu0 0.0
        %1035 = vmatprep.subr.mxu0 0.0
        %1036 = vmatpush1.msra.mxu0 0.0
        %1037 = vmatprep.subr.mxu0 0.0
        %1038 = vmatpush1.msra.mxu0 0.0
        %1039 = vmatprep.subr.mxu0 0.0
        %1040 = vmatpush1.msra.mxu0 0.0
        %1041 = vmatprep.subr.mxu0 0.0
        %1042 = vmatpush1.msra.mxu0 0.0
        %1043 = vmatprep.subr.mxu0 0.0
        %1044 = vmatpush1.msra.mxu0 0.0
        %1045 = vmatprep.subr.mxu0 0.0
        %1046 = vmatpush1.msra.mxu0 0.0
        %1047 = vmatprep.subr.mxu0 0.0
        %1048 = vmatpush1.msra.mxu0 0.0
        %1049 = vmatprep.subr.mxu0 0.0
        %1050 = vmatpush1.msra.mxu0 0.0
        %1051 = vmatprep.subr.mxu0 0.0
        %1052 = vmatpush1.msra.mxu0 0.0
        %1053 = vmatprep.subr.mxu0 0.0
        %1054 = vmatpush1.msra.mxu0 0.0
        %1055 = vmatprep.subr.mxu0 0.0
        %1056 = vmatpush1.msra.mxu0 0.0
        %1057 = vmatprep.subr.mxu0 0.0
        %1058 = vmatpush1.msra.mxu0 0.0
        %1059 = vmatprep.subr.mxu0 0.0
        %1060 = vmatpush1.msra.mxu0 0.0
        %1061 = vmatprep.subr.mxu0 0.0
        %1062 = vmatpush1.msra.mxu0 0.0
        %1063 = vmatprep.mubr.f32.mxu0 0.0
        %1064 = vmatmul.mubr.f32.gmra.mrb[0].mxu0 %v664
        %v1065 = vpop.f32.mrb[0].mxu0
        %v1066 = vadd.f32 %v914, %v1065
        %v1067 = vpop.f32.mrb[0].mxu0
        %1068 = vdwg.mxu0
        %v1070 = vlaneseq
        %v1071 = vshrl.u32 %v1070, 7
        %v1072 = vsub.s32 0, %v1071
        %v1073 = vrot.slane %v921, %v1072
        %v1076 = vsel %vm742, %v996, 0
        %v1079 = vsel %vm742, %v1066, 0
        %1081 = vmatprep.subr.mxu0 0.0
        %1082 = vmatpush1.msra.mxu0 %v916
        %1083 = vmatprep.subr.mxu0 0.0
        %1084 = vmatpush1.msra.mxu0 %v917
        %1085 = vmatprep.subr.mxu0 0.0
        %1086 = vmatpush1.msra.mxu0 %v918
        %1087 = vmatprep.subr.mxu0 0.0
        %1088 = vmatpush1.msra.mxu0 %v919
        %1089 = vmatprep.subr.mxu0 0.0
        %1090 = vmatpush1.msra.mxu0 0.0
        %1091 = vmatprep.subr.mxu0 0.0
        %1092 = vmatpush1.msra.mxu0 0.0
        %1093 = vmatprep.subr.mxu0 0.0
        %1094 = vmatpush1.msra.mxu0 0.0
        %1095 = vmatprep.subr.mxu0 0.0
        %1096 = vmatpush1.msra.mxu0 0.0
        %1097 = vmatprep.subr.mxu0 0.0
        %1098 = vmatpush1.msra.mxu0 0.0
        %1099 = vmatprep.subr.mxu0 0.0
        %1100 = vmatpush1.msra.mxu0 0.0
        %1101 = vmatprep.subr.mxu0 0.0
        %1102 = vmatpush1.msra.mxu0 0.0
        %1103 = vmatprep.subr.mxu0 0.0
        %1104 = vmatpush1.msra.mxu0 0.0
        %1105 = vmatprep.subr.mxu0 0.0
        %1106 = vmatpush1.msra.mxu0 0.0
        %1107 = vmatprep.subr.mxu0 0.0
        %1108 = vmatpush1.msra.mxu0 0.0
        %1109 = vmatprep.subr.mxu0 0.0
        %1110 = vmatpush1.msra.mxu0 0.0
        %1111 = vmatprep.subr.mxu0 0.0
        %1112 = vmatpush1.msra.mxu0 0.0
        %1113 = vmatprep.subr.mxu0 0.0
        %1114 = vmatpush1.msra.mxu0 0.0
        %1115 = vmatprep.subr.mxu0 0.0
        %1116 = vmatpush1.msra.mxu0 0.0
        %1117 = vmatprep.subr.mxu0 0.0
        %1118 = vmatpush1.msra.mxu0 0.0
        %1119 = vmatprep.subr.mxu0 0.0
        %1120 = vmatpush1.msra.mxu0 0.0
        %1121 = vmatprep.subr.mxu0 0.0
        %1122 = vmatpush1.msra.mxu0 0.0
        %1123 = vmatprep.subr.mxu0 0.0
        %1124 = vmatpush1.msra.mxu0 0.0
        %1125 = vmatprep.subr.mxu0 0.0
        %1126 = vmatpush1.msra.mxu0 0.0
        %1127 = vmatprep.subr.mxu0 0.0
        %1128 = vmatpush1.msra.mxu0 0.0
        %1129 = vmatprep.subr.mxu0 0.0
        %1130 = vmatpush1.msra.mxu0 0.0
        %1131 = vmatprep.subr.mxu0 0.0
        %1132 = vmatpush1.msra.mxu0 0.0
        %1133 = vmatprep.subr.mxu0 0.0
        %1134 = vmatpush1.msra.mxu0 0.0
        %1135 = vmatprep.subr.mxu0 0.0
        %1136 = vmatpush1.msra.mxu0 0.0
        %1137 = vmatprep.subr.mxu0 0.0
        %1138 = vmatpush1.msra.mxu0 0.0
        %1139 = vmatprep.subr.mxu0 0.0
        %1140 = vmatpush1.msra.mxu0 0.0
        %1141 = vmatprep.subr.mxu0 0.0
        %1142 = vmatpush1.msra.mxu0 0.0
        %1143 = vmatprep.subr.mxu0 0.0
        %1144 = vmatpush1.msra.mxu0 0.0
        %1145 = vmatprep.mubr.f32.mxu0 0.0
        %1146 = vmatmul.mubr.f32.gmra.mrb[0].mxu0 %v1076
        %v1147 = vpop.f32.mrb[0].mxu0
        %v1148 = vadd.f32 %v1073, %v1147
        %v1149 = vpop.f32.mrb[0].mxu0
        %1150 = vmatprep.mubr.f32.mxu0 0.0
        %1151 = vmatmul.mubr.f32.gmra.mrb[0].mxu0 %v1079
        %v1152 = vpop.f32.mrb[0].mxu0
        %v1153 = vadd.f32 %v1073, %v1152
        %v1154 = vpop.f32.mrb[0].mxu0
        %1155 = vdwg.mxu0
        %v1156 = vmax.f32 %v1148, 0.0
        %v1157 = vmax.f32 %v1153, 0.0
        %v1159 = vlaneseq
        %v1160 = vshrl.u32 %v1159, 7
        %v1161 = vsub.s32 0, %v1160
        %v1162 = vrot.slane %v928, %v1161
        %v1165 = vsel %vm742, %v1156, 0
        %v1168 = vsel %vm742, %v1157, 0
        %1170 = vmatprep.subr.mxu0 0.0
        %1171 = vmatpush1.msra.mxu0 %v923
        %1172 = vmatprep.subr.mxu0 0.0
        %1173 = vmatpush1.msra.mxu0 %v924
        %1174 = vmatprep.subr.mxu0 0.0
        %1175 = vmatpush1.msra.mxu0 %v925
        %1176 = vmatprep.subr.mxu0 0.0
        %1177 = vmatpush1.msra.mxu0 %v926
        %1178 = vmatprep.subr.mxu0 0.0
        %1179 = vmatpush1.msra.mxu0 0.0
        %1180 = vmatprep.subr.mxu0 0.0
        %1181 = vmatpush1.msra.mxu0 0.0
        %1182 = vmatprep.subr.mxu0 0.0
        %1183 = vmatpush1.msra.mxu0 0.0
        %1184 = vmatprep.subr.mxu0 0.0
        %1185 = vmatpush1.msra.mxu0 0.0
        %1186 = vmatprep.subr.mxu0 0.0
        %1187 = vmatpush1.msra.mxu0 0.0
        %1188 = vmatprep.subr.mxu0 0.0
        %1189 = vmatpush1.msra.mxu0 0.0
        %1190 = vmatprep.subr.mxu0 0.0
        %1191 = vmatpush1.msra.mxu0 0.0
        %1192 = vmatprep.subr.mxu0 0.0
        %1193 = vmatpush1.msra.mxu0 0.0
        %1194 = vmatprep.subr.mxu0 0.0
        %1195 = vmatpush1.msra.mxu0 0.0
        %1196 = vmatprep.subr.mxu0 0.0
        %1197 = vmatpush1.msra.mxu0 0.0
        %1198 = vmatprep.subr.mxu0 0.0
        %1199 = vmatpush1.msra.mxu0 0.0
        %1200 = vmatprep.subr.mxu0 0.0
        %1201 = vmatpush1.msra.mxu0 0.0
        %1202 = vmatprep.subr.mxu0 0.0
        %1203 = vmatpush1.msra.mxu0 0.0
        %1204 = vmatprep.subr.mxu0 0.0
        %1205 = vmatpush1.msra.mxu0 0.0
        %1206 = vmatprep.subr.mxu0 0.0
        %1207 = vmatpush1.msra.mxu0 0.0
        %1208 = vmatprep.subr.mxu0 0.0
        %1209 = vmatpush1.msra.mxu0 0.0
        %1210 = vmatprep.subr.mxu0 0.0
        %1211 = vmatpush1.msra.mxu0 0.0
        %1212 = vmatprep.subr.mxu0 0.0
        %1213 = vmatpush1.msra.mxu0 0.0
        %1214 = vmatprep.subr.mxu0 0.0
        %1215 = vmatpush1.msra.mxu0 0.0
        %1216 = vmatprep.subr.mxu0 0.0
        %1217 = vmatpush1.msra.mxu0 0.0
        %1218 = vmatprep.subr.mxu0 0.0
        %1219 = vmatpush1.msra.mxu0 0.0
        %1220 = vmatprep.subr.mxu0 0.0
        %1221 = vmatpush1.msra.mxu0 0.0
        %1222 = vmatprep.subr.mxu0 0.0
        %1223 = vmatpush1.msra.mxu0 0.0
        %1224 = vmatprep.subr.mxu0 0.0
        %1225 = vmatpush1.msra.mxu0 0.0
        %1226 = vmatprep.subr.mxu0 0.0
        %1227 = vmatpush1.msra.mxu0 0.0
        %1228 = vmatprep.subr.mxu0 0.0
        %1229 = vmatpush1.msra.mxu0 0.0
        %1230 = vmatprep.subr.mxu0 0.0
        %1231 = vmatpush1.msra.mxu0 0.0
        %1232 = vmatprep.subr.mxu0 0.0
        %1233 = vmatpush1.msra.mxu0 0.0
        %1234 = vmatprep.mubr.f32.mxu0 0.0
        %1235 = vmatmul.mubr.f32.gmra.mrb[0].mxu0 %v1165
        %v1236 = vpop.f32.mrb[0].mxu0
        %v1237 = vadd.f32 %v1162, %v1236
        %v1238 = vpop.f32.mrb[0].mxu0
        %1239 = vmatprep.mubr.f32.mxu0 0.0
        %1240 = vmatmul.mubr.f32.gmra.mrb[0].mxu0 %v1168
        %v1241 = vpop.f32.mrb[0].mxu0
        %v1242 = vadd.f32 %v1162, %v1241
        %v1243 = vpop.f32.mrb[0].mxu0
        %1244 = vdwg.mxu0
        %v1245 = vmax.f32 %v1237, 0.0
        %v1246 = vmax.f32 %v1242, 0.0
        %v1247 = vld [vmem:[%s459] sm:$0x1]
        %v1248 = vld [vmem:[%s459 + $0x1] sm:$0x1]
        %v1250 = vsel %vm589, %v1247, 0
        %1252 = vmatprep.subr.mxu0 0.0
        %1253 = vmatpush1.msra.mxu0 %v1245
        %1254 = vmatprep.subr.mxu0 0.0
        %1255 = vmatpush1.msra.mxu0 0.0
        %1256 = vmatprep.subr.mxu0 0.0
        %1257 = vmatpush1.msra.mxu0 0.0
        %1258 = vmatprep.subr.mxu0 0.0
        %1259 = vmatpush1.msra.mxu0 0.0
        %1260 = vmatprep.subr.mxu0 0.0
        %1261 = vmatpush1.msra.mxu0 0.0
        %1262 = vmatprep.subr.mxu0 0.0
        %1263 = vmatpush1.msra.mxu0 0.0
        %1264 = vmatprep.subr.mxu0 0.0
        %1265 = vmatpush1.msra.mxu0 0.0
        %1266 = vmatprep.subr.mxu0 0.0
        %1267 = vmatpush1.msra.mxu0 0.0
        %1268 = vmatprep.subr.mxu0 0.0
        %1269 = vmatpush1.msra.mxu0 0.0
        %1270 = vmatprep.subr.mxu0 0.0
        %1271 = vmatpush1.msra.mxu0 0.0
        %1272 = vmatprep.subr.mxu0 0.0
        %1273 = vmatpush1.msra.mxu0 0.0
        %1274 = vmatprep.subr.mxu0 0.0
        %1275 = vmatpush1.msra.mxu0 0.0
        %1276 = vmatprep.subr.mxu0 0.0
        %1277 = vmatpush1.msra.mxu0 0.0
        %1278 = vmatprep.subr.mxu0 0.0
        %1279 = vmatpush1.msra.mxu0 0.0
        %1280 = vmatprep.subr.mxu0 0.0
        %1281 = vmatpush1.msra.mxu0 0.0
        %1282 = vmatprep.subr.mxu0 0.0
        %1283 = vmatpush1.msra.mxu0 0.0
        %1284 = vmatprep.subr.mxu0 0.0
        %1285 = vmatpush1.msra.mxu0 0.0
        %1286 = vmatprep.subr.mxu0 0.0
        %1287 = vmatpush1.msra.mxu0 0.0
        %1288 = vmatprep.subr.mxu0 0.0
        %1289 = vmatpush1.msra.mxu0 0.0
        %1290 = vmatprep.subr.mxu0 0.0
        %1291 = vmatpush1.msra.mxu0 0.0
        %1292 = vmatprep.subr.mxu0 0.0
        %1293 = vmatpush1.msra.mxu0 0.0
        %1294 = vmatprep.subr.mxu0 0.0
        %1295 = vmatpush1.msra.mxu0 0.0
        %1296 = vmatprep.subr.mxu0 0.0
        %1297 = vmatpush1.msra.mxu0 0.0
        %1298 = vmatprep.subr.mxu0 0.0
        %1299 = vmatpush1.msra.mxu0 0.0
        %1300 = vmatprep.subr.mxu0 0.0
        %1301 = vmatpush1.msra.mxu0 0.0
        %1302 = vmatprep.subr.mxu0 0.0
        %1303 = vmatpush1.msra.mxu0 0.0
        %1304 = vmatprep.subr.mxu0 0.0
        %1305 = vmatpush1.msra.mxu0 0.0
        %1306 = vmatprep.subr.mxu0 0.0
        %1307 = vmatpush1.msra.mxu0 0.0
        %1308 = vmatprep.subr.mxu0 0.0
        %1309 = vmatpush1.msra.mxu0 0.0
        %1310 = vmatprep.subr.mxu0 0.0
        %1311 = vmatpush1.msra.mxu0 0.0
        %1312 = vmatprep.subr.mxu0 0.0
        %1313 = vmatpush1.msra.mxu0 0.0
        %1314 = vmatprep.subr.mxu0 0.0
        %1315 = vmatpush1.msra.mxu0 0.0
        %1316 = vmatprep.mubr.f32.mxu0 0.0
        %1317 = vmatmul.mubr.f32.gmra.mrb[0].mxu0 %v1250
        %v1318 = vpop.f32.mrb[0].mxu0
        %v1319 = vadd.f32 0.0, %v1318
        %v1320 = vpop.f32.mrb[0].mxu0
        %1321 = vdwg.mxu0
        %v1323 = vsel %vm589, %v1248, 0
        %1325 = vmatprep.subr.mxu0 0.0
        %1326 = vmatpush1.msra.mxu0 %v1246
        %1327 = vmatprep.subr.mxu0 0.0
        %1328 = vmatpush1.msra.mxu0 0.0
        %1329 = vmatprep.subr.mxu0 0.0
        %1330 = vmatpush1.msra.mxu0 0.0
        %1331 = vmatprep.subr.mxu0 0.0
        %1332 = vmatpush1.msra.mxu0 0.0
        %1333 = vmatprep.subr.mxu0 0.0
        %1334 = vmatpush1.msra.mxu0 0.0
        %1335 = vmatprep.subr.mxu0 0.0
        %1336 = vmatpush1.msra.mxu0 0.0
        %1337 = vmatprep.subr.mxu0 0.0
        %1338 = vmatpush1.msra.mxu0 0.0
        %1339 = vmatprep.subr.mxu0 0.0
        %1340 = vmatpush1.msra.mxu0 0.0
        %1341 = vmatprep.subr.mxu0 0.0
        %1342 = vmatpush1.msra.mxu0 0.0
        %1343 = vmatprep.subr.mxu0 0.0
        %1344 = vmatpush1.msra.mxu0 0.0
        %1345 = vmatprep.subr.mxu0 0.0
        %1346 = vmatpush1.msra.mxu0 0.0
        %1347 = vmatprep.subr.mxu0 0.0
        %1348 = vmatpush1.msra.mxu0 0.0
        %1349 = vmatprep.subr.mxu0 0.0
        %1350 = vmatpush1.msra.mxu0 0.0
        %1351 = vmatprep.subr.mxu0 0.0
        %1352 = vmatpush1.msra.mxu0 0.0
        %1353 = vmatprep.subr.mxu0 0.0
        %1354 = vmatpush1.msra.mxu0 0.0
        %1355 = vmatprep.subr.mxu0 0.0
        %1356 = vmatpush1.msra.mxu0 0.0
        %1357 = vmatprep.subr.mxu0 0.0
        %1358 = vmatpush1.msra.mxu0 0.0
        %1359 = vmatprep.subr.mxu0 0.0
        %1360 = vmatpush1.msra.mxu0 0.0
        %1361 = vmatprep.subr.mxu0 0.0
        %1362 = vmatpush1.msra.mxu0 0.0
        %1363 = vmatprep.subr.mxu0 0.0
        %1364 = vmatpush1.msra.mxu0 0.0
        %1365 = vmatprep.subr.mxu0 0.0
        %1366 = vmatpush1.msra.mxu0 0.0
        %1367 = vmatprep.subr.mxu0 0.0
        %1368 = vmatpush1.msra.mxu0 0.0
        %1369 = vmatprep.subr.mxu0 0.0
        %1370 = vmatpush1.msra.mxu0 0.0
        %1371 = vmatprep.subr.mxu0 0.0
        %1372 = vmatpush1.msra.mxu0 0.0
        %1373 = vmatprep.subr.mxu0 0.0
        %1374 = vmatpush1.msra.mxu0 0.0
        %1375 = vmatprep.subr.mxu0 0.0
        %1376 = vmatpush1.msra.mxu0 0.0
        %1377 = vmatprep.subr.mxu0 0.0
        %1378 = vmatpush1.msra.mxu0 0.0
        %1379 = vmatprep.subr.mxu0 0.0
        %1380 = vmatpush1.msra.mxu0 0.0
        %1381 = vmatprep.subr.mxu0 0.0
        %1382 = vmatpush1.msra.mxu0 0.0
        %1383 = vmatprep.subr.mxu0 0.0
        %1384 = vmatpush1.msra.mxu0 0.0
        %1385 = vmatprep.subr.mxu0 0.0
        %1386 = vmatpush1.msra.mxu0 0.0
        %1387 = vmatprep.subr.mxu0 0.0
        %1388 = vmatpush1.msra.mxu0 0.0
        %1389 = vmatprep.mubr.f32.mxu0 0.0
        %1390 = vmatmul.mubr.f32.gmra.mrb[0].mxu0 %v1323
        %v1391 = vpop.f32.mrb[0].mxu0
        %v1392 = vadd.f32 0.0, %v1391
        %v1393 = vpop.f32.mrb[0].mxu0
        %1394 = vdwg.mxu0
        %v1395 = vld [vmem:[%s9] sm:$0xff]
        %v1396 = vld [vmem:[%s9 + $0x8] sm:$0xff]
        %v1397 = vld [vmem:[%s9 + $0x10] sm:$0xff]
        %v1398 = vld [vmem:[%s9 + $0x18] sm:$0xff]
        %v1399 = vld [vmem:[%s9 + $0x20] sm:$0x1]
        %v1400 = vld [vmem:[%s9 + $0x21] sm:$0x1]
        %v1401 = vld [vmem:[%s9 + $0x22] sm:$0x1]
        %v1402 = vlaneseq
        %v1403 = vshrl.u32 %v1402, 7
        %v1404 = vsub.s32 0, %v1403
        %v1405 = vrot.slane %v1399, %v1404
        %v1408 = vrot.slane %v1392, 7
        %vm1409 = vcmask 1041409
        %v1410 = vsel %vm1409, %v1408, %v1319
        %v1411 = vsel %vm742, %v1410, 0
        %1413 = vmatprep.subr.mxu0 0.0
        %1414 = vmatpush1.msra.mxu0 %v1395
        %1415 = vmatprep.subr.mxu0 0.0
        %1416 = vmatpush1.msra.mxu0 %v1396
        %1417 = vmatprep.subr.mxu0 0.0
        %1418 = vmatpush1.msra.mxu0 %v1397
        %1419 = vmatprep.subr.mxu0 0.0
        %1420 = vmatpush1.msra.mxu0 %v1398
        %1421 = vmatprep.subr.mxu0 0.0
        %1422 = vmatpush1.msra.mxu0 0.0
        %1423 = vmatprep.subr.mxu0 0.0
        %1424 = vmatpush1.msra.mxu0 0.0
        %1425 = vmatprep.subr.mxu0 0.0
        %1426 = vmatpush1.msra.mxu0 0.0
        %1427 = vmatprep.subr.mxu0 0.0
        %1428 = vmatpush1.msra.mxu0 0.0
        %1429 = vmatprep.subr.mxu0 0.0
        %1430 = vmatpush1.msra.mxu0 0.0
        %1431 = vmatprep.subr.mxu0 0.0
        %1432 = vmatpush1.msra.mxu0 0.0
        %1433 = vmatprep.subr.mxu0 0.0
        %1434 = vmatpush1.msra.mxu0 0.0
        %1435 = vmatprep.subr.mxu0 0.0
        %1436 = vmatpush1.msra.mxu0 0.0
        %1437 = vmatprep.subr.mxu0 0.0
        %1438 = vmatpush1.msra.mxu0 0.0
        %1439 = vmatprep.subr.mxu0 0.0
        %1440 = vmatpush1.msra.mxu0 0.0
        %1441 = vmatprep.subr.mxu0 0.0
        %1442 = vmatpush1.msra.mxu0 0.0
        %1443 = vmatprep.subr.mxu0 0.0
        %1444 = vmatpush1.msra.mxu0 0.0
        %1445 = vmatprep.subr.mxu0 0.0
        %1446 = vmatpush1.msra.mxu0 0.0
        %1447 = vmatprep.subr.mxu0 0.0
        %1448 = vmatpush1.msra.mxu0 0.0
        %1449 = vmatprep.subr.mxu0 0.0
        %1450 = vmatpush1.msra.mxu0 0.0
        %1451 = vmatprep.subr.mxu0 0.0
        %1452 = vmatpush1.msra.mxu0 0.0
        %1453 = vmatprep.subr.mxu0 0.0
        %1454 = vmatpush1.msra.mxu0 0.0
        %1455 = vmatprep.subr.mxu0 0.0
        %1456 = vmatpush1.msra.mxu0 0.0
        %1457 = vmatprep.subr.mxu0 0.0
        %1458 = vmatpush1.msra.mxu0 0.0
        %1459 = vmatprep.subr.mxu0 0.0
        %1460 = vmatpush1.msra.mxu0 0.0
        %1461 = vmatprep.subr.mxu0 0.0
        %1462 = vmatpush1.msra.mxu0 0.0
        %1463 = vmatprep.subr.mxu0 0.0
        %1464 = vmatpush1.msra.mxu0 0.0
        %1465 = vmatprep.subr.mxu0 0.0
        %1466 = vmatpush1.msra.mxu0 0.0
        %1467 = vmatprep.subr.mxu0 0.0
        %1468 = vmatpush1.msra.mxu0 0.0
        %1469 = vmatprep.subr.mxu0 0.0
        %1470 = vmatpush1.msra.mxu0 0.0
        %1471 = vmatprep.subr.mxu0 0.0
        %1472 = vmatpush1.msra.mxu0 0.0
        %1473 = vmatprep.subr.mxu0 0.0
        %1474 = vmatpush1.msra.mxu0 0.0
        %1475 = vmatprep.subr.mxu0 0.0
        %1476 = vmatpush1.msra.mxu0 0.0
        %1477 = vmatprep.mubr.f32.mxu0 0.0
        %1478 = vmatmul.mubr.f32.gmra.mrb[0].mxu0 %v1411
        %v1479 = vpop.f32.mrb[0].mxu0
        %v1480 = vadd.f32 %v1405, %v1479
        %v1481 = vpop.f32.mrb[0].mxu0
        %1482 = vdwg.mxu0
        %v1483 = vtanh.pop %v1480
        %v1484 = vlaneseq
        %v1485 = vshrl.u32 %v1484, 7
        %v1486 = vsub.s32 0, %v1485
        %v1487 = vrot.slane %v1400, %v1486
        %v1488 = vmul.f32 %v1483, %v1487
        %vm1489 = vcmask 254976
        %v1490 = vsel %vm1489, %v1488, 0.0
        %1491 = vadd.xlane.f32.xlu0 %v1490
        %v1492 = vpop.xlane.xlu0 %1491
        %v1493 = vlaneseq
        %v1494 = vshrl.u32 %v1493, 7
        %v1495 = vsub.s32 0, %v1494
        %v1496 = vrot.slane %v1401, %v1495
        %v1497 = vadd.f32 %v1492, %v1496
        %v1498 = vld [vmem:[%s8] sm:$0xff]
        %v1499 = vld [vmem:[%s8 + $0x8] sm:$0xff]
        %v1500 = vld [vmem:[%s8 + $0x10] sm:$0xff]
        %v1501 = vld [vmem:[%s8 + $0x18] sm:$0xff]
        %v1502 = vld [vmem:[%s8] sm:$0x1]
        %v1503 = vlaneseq
        %v1504 = vshrl.u32 %v1503, 7
        %v1505 = vld [vmem:[%s468] sm:$0x1]
        %v1506 = vld [vmem:[%s468 + $0x1] sm:$0x1]
        %v1507 = vlaneseq
        %v1508 = vshrl.u32 %v1507, 7
        %v1509 = vsub.s32 0, %v1508
        %v1510 = vrot.slane %v1505, %v1509
        %v1511 = vlaneseq
        %v1512 = vshrl.u32 %v1511, 7
        %v1513 = vsub.s32 0, %v1512
        %v1514 = vrot.slane %v1506, %v1513
        %vm1515 = vcmp.eq.s32.totalorder %v1504, %v1510
        %vm1516 = vcmp.eq.s32.totalorder %v1504, %v1514
        %v1517 = vsel %vm1515, 1, 0
        %v1518 = vsel %vm1516, 1, 0
        %v1519 = vcvt.s32.f32 %v1517
        %v1520 = vcvt.s32.f32 %v1518
        %v1522 = vsel %vm742, %v1498, 0
        %v1525 = vsel %vm742, %v1499, 0
        %v1528 = vsel %vm742, %v1500, 0
        %v1531 = vsel %vm742, %v1501, 0
        %v1534 = vsel %vm742, %v1245, 0
        %1536 = vmatprep.subr.mxu0 0.0
        %1537 = vmatpush1.xpose.msra.mxu0 %v1534
        %1538 = vmatprep.subr.mxu0 0.0
        %1539 = vmatpush1.xpose.msra.mxu0 0.0
        %1540 = vmatprep.subr.mxu0 0.0
        %1541 = vmatpush1.xpose.msra.mxu0 0.0
        %1542 = vmatprep.subr.mxu0 0.0
        %1543 = vmatpush1.xpose.msra.mxu0 0.0
        %1544 = vmatprep.subr.mxu0 0.0
        %1545 = vmatpush1.xpose.msra.mxu0 0.0
        %1546 = vmatprep.subr.mxu0 0.0
        %1547 = vmatpush1.xpose.msra.mxu0 0.0
        %1548 = vmatprep.subr.mxu0 0.0
        %1549 = vmatpush1.xpose.msra.mxu0 0.0
        %1550 = vmatprep.subr.mxu0 0.0
        %1551 = vmatpush1.xpose.msra.mxu0 0.0
        %1552 = vmatprep.subr.mxu0 0.0
        %1553 = vmatpush1.xpose.msra.mxu0 0.0
        %1554 = vmatprep.subr.mxu0 0.0
        %1555 = vmatpush1.xpose.msra.mxu0 0.0
        %1556 = vmatprep.subr.mxu0 0.0
        %1557 = vmatpush1.xpose.msra.mxu0 0.0
        %1558 = vmatprep.subr.mxu0 0.0
        %1559 = vmatpush1.xpose.msra.mxu0 0.0
        %1560 = vmatprep.subr.mxu0 0.0
        %1561 = vmatpush1.xpose.msra.mxu0 0.0
        %1562 = vmatprep.subr.mxu0 0.0
        %1563 = vmatpush1.xpose.msra.mxu0 0.0
        %1564 = vmatprep.subr.mxu0 0.0
        %1565 = vmatpush1.xpose.msra.mxu0 0.0
        %1566 = vmatprep.subr.mxu0 0.0
        %1567 = vmatpush1.xpose.msra.mxu0 0.0
        %1568 = vmatprep.subr.mxu0 0.0
        %1569 = vmatpush1.xpose.msra.mxu0 0.0
        %1570 = vmatprep.subr.mxu0 0.0
        %1571 = vmatpush1.xpose.msra.mxu0 0.0
        %1572 = vmatprep.subr.mxu0 0.0
        %1573 = vmatpush1.xpose.msra.mxu0 0.0
        %1574 = vmatprep.subr.mxu0 0.0
        %1575 = vmatpush1.xpose.msra.mxu0 0.0
        %1576 = vmatprep.subr.mxu0 0.0
        %1577 = vmatpush1.xpose.msra.mxu0 0.0
        %1578 = vmatprep.subr.mxu0 0.0
        %1579 = vmatpush1.xpose.msra.mxu0 0.0
        %1580 = vmatprep.subr.mxu0 0.0
        %1581 = vmatpush1.xpose.msra.mxu0 0.0
        %1582 = vmatprep.subr.mxu0 0.0
        %1583 = vmatpush1.xpose.msra.mxu0 0.0
        %1584 = vmatprep.subr.mxu0 0.0
        %1585 = vmatpush1.xpose.msra.mxu0 0.0
        %1586 = vmatprep.subr.mxu0 0.0
        %1587 = vmatpush1.xpose.msra.mxu0 0.0
        %1588 = vmatprep.subr.mxu0 0.0
        %1589 = vmatpush1.xpose.msra.mxu0 0.0
        %1590 = vmatprep.subr.mxu0 0.0
        %1591 = vmatpush1.xpose.msra.mxu0 0.0
        %1592 = vmatprep.subr.mxu0 0.0
        %1593 = vmatpush1.xpose.msra.mxu0 0.0
        %1594 = vmatprep.subr.mxu0 0.0
        %1595 = vmatpush1.xpose.msra.mxu0 0.0
        %1596 = vmatprep.subr.mxu0 0.0
        %1597 = vmatpush1.xpose.msra.mxu0 0.0
        %1598 = vmatprep.subr.mxu0 0.0
        %1599 = vmatpush1.xpose.msra.mxu0 0.0
        %1600 = vmatprep.mubr.f32.mxu0 0.0
        %1601 = vmatmul.mubr.f32.gmra.mrb[0].mxu0 %v1522
        %v1602 = vpop.f32.mrb[0].mxu0
        %v1603 = vadd.f32 0.0, %v1602
        %v1604 = vpop.f32.mrb[0].mxu0
        %1605 = vmatprep.mubr.f32.mxu0 0.0
        %1606 = vmatmul.mubr.f32.gmra.mrb[0].mxu0 %v1525
        %v1607 = vpop.f32.mrb[0].mxu0
        %v1608 = vadd.f32 0.0, %v1607
        %v1609 = vpop.f32.mrb[0].mxu0
        %1610 = vmatprep.mubr.f32.mxu0 0.0
        %1611 = vmatmul.mubr.f32.gmra.mrb[0].mxu0 %v1528
        %v1612 = vpop.f32.mrb[0].mxu0
        %v1613 = vadd.f32 0.0, %v1612
        %v1614 = vpop.f32.mrb[0].mxu0
        %1615 = vmatprep.mubr.f32.mxu0 0.0
        %1616 = vmatmul.mubr.f32.gmra.mrb[0].mxu0 %v1531
        %v1617 = vpop.f32.mrb[0].mxu0
        %v1618 = vadd.f32 0.0, %v1617
        %v1619 = vpop.f32.mrb[0].mxu0
        %1620 = vdwg.mxu0
        %v1622 = vsel %vm742, %v1246, 0
        %1624 = vmatprep.subr.mxu0 0.0
        %1625 = vmatpush1.xpose.msra.mxu0 %v1622
        %1626 = vmatprep.subr.mxu0 0.0
        %1627 = vmatpush1.xpose.msra.mxu0 0.0
        %1628 = vmatprep.subr.mxu0 0.0
        %1629 = vmatpush1.xpose.msra.mxu0 0.0
        %1630 = vmatprep.subr.mxu0 0.0
        %1631 = vmatpush1.xpose.msra.mxu0 0.0
        %1632 = vmatprep.subr.mxu0 0.0
        %1633 = vmatpush1.xpose.msra.mxu0 0.0
        %1634 = vmatprep.subr.mxu0 0.0
        %1635 = vmatpush1.xpose.msra.mxu0 0.0
        %1636 = vmatprep.subr.mxu0 0.0
        %1637 = vmatpush1.xpose.msra.mxu0 0.0
        %1638 = vmatprep.subr.mxu0 0.0
        %1639 = vmatpush1.xpose.msra.mxu0 0.0
        %1640 = vmatprep.subr.mxu0 0.0
        %1641 = vmatpush1.xpose.msra.mxu0 0.0
        %1642 = vmatprep.subr.mxu0 0.0
        %1643 = vmatpush1.xpose.msra.mxu0 0.0
        %1644 = vmatprep.subr.mxu0 0.0
        %1645 = vmatpush1.xpose.msra.mxu0 0.0
        %1646 = vmatprep.subr.mxu0 0.0
        %1647 = vmatpush1.xpose.msra.mxu0 0.0
        %1648 = vmatprep.subr.mxu0 0.0
        %1649 = vmatpush1.xpose.msra.mxu0 0.0
        %1650 = vmatprep.subr.mxu0 0.0
        %1651 = vmatpush1.xpose.msra.mxu0 0.0
        %1652 = vmatprep.subr.mxu0 0.0
        %1653 = vmatpush1.xpose.msra.mxu0 0.0
        %1654 = vmatprep.subr.mxu0 0.0
        %1655 = vmatpush1.xpose.msra.mxu0 0.0
        %1656 = vmatprep.subr.mxu0 0.0
        %1657 = vmatpush1.xpose.msra.mxu0 0.0
        %1658 = vmatprep.subr.mxu0 0.0
        %1659 = vmatpush1.xpose.msra.mxu0 0.0
        %1660 = vmatprep.subr.mxu0 0.0
        %1661 = vmatpush1.xpose.msra.mxu0 0.0
        %1662 = vmatprep.subr.mxu0 0.0
        %1663 = vmatpush1.xpose.msra.mxu0 0.0
        %1664 = vmatprep.subr.mxu0 0.0
        %1665 = vmatpush1.xpose.msra.mxu0 0.0
        %1666 = vmatprep.subr.mxu0 0.0
        %1667 = vmatpush1.xpose.msra.mxu0 0.0
        %1668 = vmatprep.subr.mxu0 0.0
        %1669 = vmatpush1.xpose.msra.mxu0 0.0
        %1670 = vmatprep.subr.mxu0 0.0
        %1671 = vmatpush1.xpose.msra.mxu0 0.0
        %1672 = vmatprep.subr.mxu0 0.0
        %1673 = vmatpush1.xpose.msra.mxu0 0.0
        %1674 = vmatprep.subr.mxu0 0.0
        %1675 = vmatpush1.xpose.msra.mxu0 0.0
        %1676 = vmatprep.subr.mxu0 0.0
        %1677 = vmatpush1.xpose.msra.mxu0 0.0
        %1678 = vmatprep.subr.mxu0 0.0
        %1679 = vmatpush1.xpose.msra.mxu0 0.0
        %1680 = vmatprep.subr.mxu0 0.0
        %1681 = vmatpush1.xpose.msra.mxu0 0.0
        %1682 = vmatprep.subr.mxu0 0.0
        %1683 = vmatpush1.xpose.msra.mxu0 0.0
        %1684 = vmatprep.subr.mxu0 0.0
        %1685 = vmatpush1.xpose.msra.mxu0 0.0
        %1686 = vmatprep.subr.mxu0 0.0
        %1687 = vmatpush1.xpose.msra.mxu0 0.0
        %1688 = vmatprep.mubr.f32.mxu0 0.0
        %1689 = vmatmul.mubr.f32.gmra.mrb[0].mxu0 %v1522
        %v1690 = vpop.f32.mrb[0].mxu0
        %v1691 = vadd.f32 0.0, %v1690
        %v1692 = vpop.f32.mrb[0].mxu0
        %1693 = vmatprep.mubr.f32.mxu0 0.0
        %1694 = vmatmul.mubr.f32.gmra.mrb[0].mxu0 %v1525
        %v1695 = vpop.f32.mrb[0].mxu0
        %v1696 = vadd.f32 0.0, %v1695
        %v1697 = vpop.f32.mrb[0].mxu0
        %1698 = vmatprep.mubr.f32.mxu0 0.0
        %1699 = vmatmul.mubr.f32.gmra.mrb[0].mxu0 %v1528
        %v1700 = vpop.f32.mrb[0].mxu0
        %v1701 = vadd.f32 0.0, %v1700
        %v1702 = vpop.f32.mrb[0].mxu0
        %1703 = vmatprep.mubr.f32.mxu0 0.0
        %1704 = vmatmul.mubr.f32.gmra.mrb[0].mxu0 %v1531
        %v1705 = vpop.f32.mrb[0].mxu0
        %v1706 = vadd.f32 0.0, %v1705
        %v1707 = vpop.f32.mrb[0].mxu0
        %1708 = vdwg.mxu0
        %v1709 = vld [vmem:[%s477] sm:$0xf]
        %v1710 = vld [vmem:[%s477 + $0x4] sm:$0xf]
        %1711 = vrot.lane.b32.xlu0 %v1498, 96
        %v1712 = vpop.permute.xlu0 %1711
        %1713 = vrot.lane.b32.xlu0 %v1499, 96
        %v1714 = vpop.permute.xlu0 %1713
        %1715 = vrot.lane.b32.xlu0 %v1500, 96
        %v1716 = vpop.permute.xlu0 %1715
        %1717 = vrot.lane.b32.xlu0 %v1501, 96
        %v1718 = vpop.permute.xlu0 %1717
        %vm1719 = vcmask 31744
        %v1720 = vsel %vm1719, %v1712, 0
        %v1722 = vsel %vm1719, %v1714, 0
        %v1724 = vsel %vm1719, %v1716, 0
        %v1726 = vsel %vm1719, %v1718, 0
        %vm1728 = vcmask 1043456
        %v1730 = vsel %vm1728, %v1709, 0
        %1732 = vmatprep.subr.mxu0 0.0
        %1733 = vmatpush1.msra.mxu0 %v1730
        %1734 = vmatprep.subr.mxu0 0.0
        %1735 = vmatpush1.msra.mxu0 0.0
        %1736 = vmatprep.subr.mxu0 0.0
        %1737 = vmatpush1.msra.mxu0 0.0
        %1738 = vmatprep.subr.mxu0 0.0
        %1739 = vmatpush1.msra.mxu0 0.0
        %1740 = vmatprep.subr.mxu0 0.0
        %1741 = vmatpush1.msra.mxu0 0.0
        %1742 = vmatprep.subr.mxu0 0.0
        %1743 = vmatpush1.msra.mxu0 0.0
        %1744 = vmatprep.subr.mxu0 0.0
        %1745 = vmatpush1.msra.mxu0 0.0
        %1746 = vmatprep.subr.mxu0 0.0
        %1747 = vmatpush1.msra.mxu0 0.0
        %1748 = vmatprep.subr.mxu0 0.0
        %1749 = vmatpush1.msra.mxu0 0.0
        %1750 = vmatprep.subr.mxu0 0.0
        %1751 = vmatpush1.msra.mxu0 0.0
        %1752 = vmatprep.subr.mxu0 0.0
        %1753 = vmatpush1.msra.mxu0 0.0
        %1754 = vmatprep.subr.mxu0 0.0
        %1755 = vmatpush1.msra.mxu0 0.0
        %1756 = vmatprep.subr.mxu0 0.0
        %1757 = vmatpush1.msra.mxu0 0.0
        %1758 = vmatprep.subr.mxu0 0.0
        %1759 = vmatpush1.msra.mxu0 0.0
        %1760 = vmatprep.subr.mxu0 0.0
        %1761 = vmatpush1.msra.mxu0 0.0
        %1762 = vmatprep.subr.mxu0 0.0
        %1763 = vmatpush1.msra.mxu0 0.0
        %1764 = vmatprep.subr.mxu0 0.0
        %1765 = vmatpush1.msra.mxu0 0.0
        %1766 = vmatprep.subr.mxu0 0.0
        %1767 = vmatpush1.msra.mxu0 0.0
        %1768 = vmatprep.subr.mxu0 0.0
        %1769 = vmatpush1.msra.mxu0 0.0
        %1770 = vmatprep.subr.mxu0 0.0
        %1771 = vmatpush1.msra.mxu0 0.0
        %1772 = vmatprep.subr.mxu0 0.0
        %1773 = vmatpush1.msra.mxu0 0.0
        %1774 = vmatprep.subr.mxu0 0.0
        %1775 = vmatpush1.msra.mxu0 0.0
        %1776 = vmatprep.subr.mxu0 0.0
        %1777 = vmatpush1.msra.mxu0 0.0
        %1778 = vmatprep.subr.mxu0 0.0
        %1779 = vmatpush1.msra.mxu0 0.0
        %1780 = vmatprep.subr.mxu0 0.0
        %1781 = vmatpush1.msra.mxu0 0.0
        %1782 = vmatprep.subr.mxu0 0.0
        %1783 = vmatpush1.msra.mxu0 0.0
        %1784 = vmatprep.subr.mxu0 0.0
        %1785 = vmatpush1.msra.mxu0 0.0
        %1786 = vmatprep.subr.mxu0 0.0
        %1787 = vmatpush1.msra.mxu0 0.0
        %1788 = vmatprep.subr.mxu0 0.0
        %1789 = vmatpush1.msra.mxu0 0.0
        %1790 = vmatprep.subr.mxu0 0.0
        %1791 = vmatpush1.msra.mxu0 0.0
        %1792 = vmatprep.subr.mxu0 0.0
        %1793 = vmatpush1.msra.mxu0 0.0
        %1794 = vmatprep.subr.mxu0 0.0
        %1795 = vmatpush1.msra.mxu0 0.0
        %1796 = vmatprep.mubr.f32.mxu0 0.0
        %1797 = vmatmul.mubr.f32.gmra.mrb[0].mxu0 %v1720
        %v1798 = vpop.f32.mrb[0].mxu0
        %v1799 = vadd.f32 0.0, %v1798
        %v1800 = vpop.f32.mrb[0].mxu0
        %1801 = vmatprep.mubr.f32.mxu0 0.0
        %1802 = vmatmul.mubr.f32.gmra.mrb[0].mxu0 %v1722
        %v1803 = vpop.f32.mrb[0].mxu0
        %v1804 = vadd.f32 0.0, %v1803
        %v1805 = vpop.f32.mrb[0].mxu0
        %1806 = vmatprep.mubr.f32.mxu0 0.0
        %1807 = vmatmul.mubr.f32.gmra.mrb[0].mxu0 %v1724
        %v1808 = vpop.f32.mrb[0].mxu0
        %v1809 = vadd.f32 0.0, %v1808
        %v1810 = vpop.f32.mrb[0].mxu0
        %1811 = vmatprep.mubr.f32.mxu0 0.0
        %1812 = vmatmul.mubr.f32.gmra.mrb[0].mxu0 %v1726
        %v1813 = vpop.f32.mrb[0].mxu0
        %v1814 = vadd.f32 0.0, %v1813
        %v1815 = vpop.f32.mrb[0].mxu0
        %1816 = vdwg.mxu0
        %v1818 = vsel %vm1728, %v1710, 0
        %1820 = vmatprep.subr.mxu0 0.0
        %1821 = vmatpush1.msra.mxu0 %v1818
        %1822 = vmatprep.subr.mxu0 0.0
        %1823 = vmatpush1.msra.mxu0 0.0
        %1824 = vmatprep.subr.mxu0 0.0
        %1825 = vmatpush1.msra.mxu0 0.0
        %1826 = vmatprep.subr.mxu0 0.0
        %1827 = vmatpush1.msra.mxu0 0.0
        %1828 = vmatprep.subr.mxu0 0.0
        %1829 = vmatpush1.msra.mxu0 0.0
        %1830 = vmatprep.subr.mxu0 0.0
        %1831 = vmatpush1.msra.mxu0 0.0
        %1832 = vmatprep.subr.mxu0 0.0
        %1833 = vmatpush1.msra.mxu0 0.0
        %1834 = vmatprep.subr.mxu0 0.0
        %1835 = vmatpush1.msra.mxu0 0.0
        %1836 = vmatprep.subr.mxu0 0.0
        %1837 = vmatpush1.msra.mxu0 0.0
        %1838 = vmatprep.subr.mxu0 0.0
        %1839 = vmatpush1.msra.mxu0 0.0
        %1840 = vmatprep.subr.mxu0 0.0
        %1841 = vmatpush1.msra.mxu0 0.0
        %1842 = vmatprep.subr.mxu0 0.0
        %1843 = vmatpush1.msra.mxu0 0.0
        %1844 = vmatprep.subr.mxu0 0.0
        %1845 = vmatpush1.msra.mxu0 0.0
        %1846 = vmatprep.subr.mxu0 0.0
        %1847 = vmatpush1.msra.mxu0 0.0
        %1848 = vmatprep.subr.mxu0 0.0
        %1849 = vmatpush1.msra.mxu0 0.0
        %1850 = vmatprep.subr.mxu0 0.0
        %1851 = vmatpush1.msra.mxu0 0.0
        %1852 = vmatprep.subr.mxu0 0.0
        %1853 = vmatpush1.msra.mxu0 0.0
        %1854 = vmatprep.subr.mxu0 0.0
        %1855 = vmatpush1.msra.mxu0 0.0
        %1856 = vmatprep.subr.mxu0 0.0
        %1857 = vmatpush1.msra.mxu0 0.0
        %1858 = vmatprep.subr.mxu0 0.0
        %1859 = vmatpush1.msra.mxu0 0.0
        %1860 = vmatprep.subr.mxu0 0.0
        %1861 = vmatpush1.msra.mxu0 0.0
        %1862 = vmatprep.subr.mxu0 0.0
        %1863 = vmatpush1.msra.mxu0 0.0
        %1864 = vmatprep.subr.mxu0 0.0
        %1865 = vmatpush1.msra.mxu0 0.0
        %1866 = vmatprep.subr.mxu0 0.0
        %1867 = vmatpush1.msra.mxu0 0.0
        %1868 = vmatprep.subr.mxu0 0.0
        %1869 = vmatpush1.msra.mxu0 0.0
        %1870 = vmatprep.subr.mxu0 0.0
        %1871 = vmatpush1.msra.mxu0 0.0
        %1872 = vmatprep.subr.mxu0 0.0
        %1873 = vmatpush1.msra.mxu0 0.0
        %1874 = vmatprep.subr.mxu0 0.0
        %1875 = vmatpush1.msra.mxu0 0.0
        %1876 = vmatprep.subr.mxu0 0.0
        %1877 = vmatpush1.msra.mxu0 0.0
        %1878 = vmatprep.subr.mxu0 0.0
        %1879 = vmatpush1.msra.mxu0 0.0
        %1880 = vmatprep.subr.mxu0 0.0
        %1881 = vmatpush1.msra.mxu0 0.0
        %1882 = vmatprep.subr.mxu0 0.0
        %1883 = vmatpush1.msra.mxu0 0.0
        %1884 = vmatprep.mubr.f32.mxu0 0.0
        %1885 = vmatmul.mubr.f32.gmra.mrb[0].mxu0 %v1720
        %v1886 = vpop.f32.mrb[0].mxu0
        %v1887 = vadd.f32 0.0, %v1886
        %v1888 = vpop.f32.mrb[0].mxu0
        %1889 = vmatprep.mubr.f32.mxu0 0.0
        %1890 = vmatmul.mubr.f32.gmra.mrb[0].mxu0 %v1722
        %v1891 = vpop.f32.mrb[0].mxu0
        %v1892 = vadd.f32 0.0, %v1891
        %v1893 = vpop.f32.mrb[0].mxu0
        %1894 = vmatprep.mubr.f32.mxu0 0.0
        %1895 = vmatmul.mubr.f32.gmra.mrb[0].mxu0 %v1724
        %v1896 = vpop.f32.mrb[0].mxu0
        %v1897 = vadd.f32 0.0, %v1896
        %v1898 = vpop.f32.mrb[0].mxu0
        %1899 = vmatprep.mubr.f32.mxu0 0.0
        %1900 = vmatmul.mubr.f32.gmra.mrb[0].mxu0 %v1726
        %v1901 = vpop.f32.mrb[0].mxu0
        %v1902 = vadd.f32 0.0, %v1901
        %v1903 = vpop.f32.mrb[0].mxu0
        %1904 = vdwg.mxu0
        %v1905 = vlaneseq
        %v1906 = vshrl.u32 %v1905, 7
        %v1907 = vsub.s32 0, %v1906
        %v1908 = vrot.slane %v1319, %v1907
        %v1909 = vlaneseq
        %v1910 = vshrl.u32 %v1909, 7
        %v1911 = vsub.s32 0, %v1910
        %v1912 = vrot.slane %v1392, %v1911
        %1915 = vrot.lane.b32.xlu0 %v1908, 36
        %v1916 = vpop.permute.xlu0 %1915
        %1917 = vrot.lane.b32.xlu0 %v1912, 36
        %v1918 = vpop.permute.xlu0 %1917
        %v1921 = vmul.f32 %v1498, %v1916
        %v1922 = vmul.f32 %v1499, %v1916
        %v1923 = vmul.f32 %v1500, %v1916
        %v1924 = vmul.f32 %v1501, %v1916
        %v1925 = vmul.f32 %v1498, %v1918
        %v1926 = vmul.f32 %v1499, %v1918
        %v1927 = vmul.f32 %v1500, %v1918
        %v1928 = vmul.f32 %v1501, %v1918
        %1937 = vrot.lane.b32.xlu0 %v1921, 92
        %v1938 = vpop.permute.xlu0 %1937
        %1939 = vrot.lane.b32.xlu0 %v1922, 92
        %v1940 = vpop.permute.xlu0 %1939
        %1941 = vrot.lane.b32.xlu0 %v1923, 92
        %v1942 = vpop.permute.xlu0 %1941
        %1943 = vrot.lane.b32.xlu0 %v1924, 92
        %v1944 = vpop.permute.xlu0 %1943
        %1945 = vrot.lane.b32.xlu0 %v1925, 92
        %v1946 = vpop.permute.xlu0 %1945
        %1947 = vrot.lane.b32.xlu0 %v1926, 92
        %v1948 = vpop.permute.xlu0 %1947
        %1949 = vrot.lane.b32.xlu0 %v1927, 92
        %v1950 = vpop.permute.xlu0 %1949
        %1951 = vrot.lane.b32.xlu0 %v1928, 92
        %v1952 = vpop.permute.xlu0 %1951
        %v1961 = vsel %vm742, %v1938, 0.0
        %1962 = vadd.xlane.f32.xlu0 %v1961
        %v1963 = vpop.xlane.xlu0 %1962
        %v1964 = vsel %vm742, %v1940, 0.0
        %1965 = vadd.xlane.f32.xlu0 %v1964
        %v1966 = vpop.xlane.xlu0 %1965
        %v1967 = vsel %vm742, %v1942, 0.0
        %1968 = vadd.xlane.f32.xlu0 %v1967
        %v1969 = vpop.xlane.xlu0 %1968
        %v1970 = vsel %vm742, %v1944, 0.0
        %1971 = vadd.xlane.f32.xlu0 %v1970
        %v1972 = vpop.xlane.xlu0 %1971
        %v1973 = vsel %vm742, %v1946, 0.0
        %1974 = vadd.xlane.f32.xlu0 %v1973
        %v1975 = vpop.xlane.xlu0 %1974
        %v1976 = vsel %vm742, %v1948, 0.0
        %1977 = vadd.xlane.f32.xlu0 %v1976
        %v1978 = vpop.xlane.xlu0 %1977
        %v1979 = vsel %vm742, %v1950, 0.0
        %1980 = vadd.xlane.f32.xlu0 %v1979
        %v1981 = vpop.xlane.xlu0 %1980
        %v1982 = vsel %vm742, %v1952, 0.0
        %1983 = vadd.xlane.f32.xlu0 %v1982
        %v1984 = vpop.xlane.xlu0 %1983
        %v1986 = vsel %vm589, %v1603, 0
        %v1989 = vsel %vm589, %v1608, 0
        %v1992 = vsel %vm589, %v1613, 0
        %v1995 = vsel %vm589, %v1618, 0
        %1997 = vmatprep.subr.mxu0 0.0
        %1998 = vmatpush1.msra.mxu0 %v1519
        %1999 = vmatprep.subr.mxu0 0.0
        %2000 = vmatpush1.msra.mxu0 0.0
        %2001 = vmatprep.subr.mxu0 0.0
        %2002 = vmatpush1.msra.mxu0 0.0
        %2003 = vmatprep.subr.mxu0 0.0
        %2004 = vmatpush1.msra.mxu0 0.0
        %2005 = vmatprep.subr.mxu0 0.0
        %2006 = vmatpush1.msra.mxu0 0.0
        %2007 = vmatprep.subr.mxu0 0.0
        %2008 = vmatpush1.msra.mxu0 0.0
        %2009 = vmatprep.subr.mxu0 0.0
        %2010 = vmatpush1.msra.mxu0 0.0
        %2011 = vmatprep.subr.mxu0 0.0
        %2012 = vmatpush1.msra.mxu0 0.0
        %2013 = vmatprep.subr.mxu0 0.0
        %2014 = vmatpush1.msra.mxu0 0.0
        %2015 = vmatprep.subr.mxu0 0.0
        %2016 = vmatpush1.msra.mxu0 0.0
        %2017 = vmatprep.subr.mxu0 0.0
        %2018 = vmatpush1.msra.mxu0 0.0
        %2019 = vmatprep.subr.mxu0 0.0
        %2020 = vmatpush1.msra.mxu0 0.0
        %2021 = vmatprep.subr.mxu0 0.0
        %2022 = vmatpush1.msra.mxu0 0.0
        %2023 = vmatprep.subr.mxu0 0.0
        %2024 = vmatpush1.msra.mxu0 0.0
        %2025 = vmatprep.subr.mxu0 0.0
        %2026 = vmatpush1.msra.mxu0 0.0
        %2027 = vmatprep.subr.mxu0 0.0
        %2028 = vmatpush1.msra.mxu0 0.0
        %2029 = vmatprep.subr.mxu0 0.0
        %2030 = vmatpush1.msra.mxu0 0.0
        %2031 = vmatprep.subr.mxu0 0.0
        %2032 = vmatpush1.msra.mxu0 0.0
        %2033 = vmatprep.subr.mxu0 0.0
        %2034 = vmatpush1.msra.mxu0 0.0
        %2035 = vmatprep.subr.mxu0 0.0
        %2036 = vmatpush1.msra.mxu0 0.0
        %2037 = vmatprep.subr.mxu0 0.0
        %2038 = vmatpush1.msra.mxu0 0.0
        %2039 = vmatprep.subr.mxu0 0.0
        %2040 = vmatpush1.msra.mxu0 0.0
        %2041 = vmatprep.subr.mxu0 0.0
        %2042 = vmatpush1.msra.mxu0 0.0
        %2043 = vmatprep.subr.mxu0 0.0
        %2044 = vmatpush1.msra.mxu0 0.0
        %2045 = vmatprep.subr.mxu0 0.0
        %2046 = vmatpush1.msra.mxu0 0.0
        %2047 = vmatprep.subr.mxu0 0.0
        %2048 = vmatpush1.msra.mxu0 0.0
        %2049 = vmatprep.subr.mxu0 0.0
        %2050 = vmatpush1.msra.mxu0 0.0
        %2051 = vmatprep.subr.mxu0 0.0
        %2052 = vmatpush1.msra.mxu0 0.0
        %2053 = vmatprep.subr.mxu0 0.0
        %2054 = vmatpush1.msra.mxu0 0.0
        %2055 = vmatprep.subr.mxu0 0.0
        %2056 = vmatpush1.msra.mxu0 0.0
        %2057 = vmatprep.subr.mxu0 0.0
        %2058 = vmatpush1.msra.mxu0 0.0
        %2059 = vmatprep.subr.mxu0 0.0
        %2060 = vmatpush1.msra.mxu0 0.0
        %2061 = vmatprep.mubr.f32.mxu0 0.0
        %2062 = vmatmul.mubr.f32.gmra.mrb[0].mxu0 %v1986
        %v2063 = vpop.f32.mrb[0].mxu0
        %v2064 = vadd.f32 %v1799, %v2063
        %v2065 = vpop.f32.mrb[0].mxu0
        %2066 = vmatprep.mubr.f32.mxu0 0.0
        %2067 = vmatmul.mubr.f32.gmra.mrb[0].mxu0 %v1989
        %v2068 = vpop.f32.mrb[0].mxu0
        %v2069 = vadd.f32 %v1804, %v2068
        %v2070 = vpop.f32.mrb[0].mxu0
        %2071 = vmatprep.mubr.f32.mxu0 0.0
        %2072 = vmatmul.mubr.f32.gmra.mrb[0].mxu0 %v1992
        %v2073 = vpop.f32.mrb[0].mxu0
        %v2074 = vadd.f32 %v1809, %v2073
        %v2075 = vpop.f32.mrb[0].mxu0
        %2076 = vmatprep.mubr.f32.mxu0 0.0
        %2077 = vmatmul.mubr.f32.gmra.mrb[0].mxu0 %v1995
        %v2078 = vpop.f32.mrb[0].mxu0
        %v2079 = vadd.f32 %v1814, %v2078
        %v2080 = vpop.f32.mrb[0].mxu0
        %2081 = vdwg.mxu0
        %v2083 = vsel %vm589, %v1691, 0
        %v2086 = vsel %vm589, %v1696, 0
        %v2089 = vsel %vm589, %v1701, 0
        %v2092 = vsel %vm589, %v1706, 0
        %2094 = vmatprep.subr.mxu0 0.0
        %2095 = vmatpush1.msra.mxu0 %v1520
        %2096 = vmatprep.subr.mxu0 0.0
        %2097 = vmatpush1.msra.mxu0 0.0
        %2098 = vmatprep.subr.mxu0 0.0
        %2099 = vmatpush1.msra.mxu0 0.0
        %2100 = vmatprep.subr.mxu0 0.0
        %2101 = vmatpush1.msra.mxu0 0.0
        %2102 = vmatprep.subr.mxu0 0.0
        %2103 = vmatpush1.msra.mxu0 0.0
        %2104 = vmatprep.subr.mxu0 0.0
        %2105 = vmatpush1.msra.mxu0 0.0
        %2106 = vmatprep.subr.mxu0 0.0
        %2107 = vmatpush1.msra.mxu0 0.0
        %2108 = vmatprep.subr.mxu0 0.0
        %2109 = vmatpush1.msra.mxu0 0.0
        %2110 = vmatprep.subr.mxu0 0.0
        %2111 = vmatpush1.msra.mxu0 0.0
        %2112 = vmatprep.subr.mxu0 0.0
        %2113 = vmatpush1.msra.mxu0 0.0
        %2114 = vmatprep.subr.mxu0 0.0
        %2115 = vmatpush1.msra.mxu0 0.0
        %2116 = vmatprep.subr.mxu0 0.0
        %2117 = vmatpush1.msra.mxu0 0.0
        %2118 = vmatprep.subr.mxu0 0.0
        %2119 = vmatpush1.msra.mxu0 0.0
        %2120 = vmatprep.subr.mxu0 0.0
        %2121 = vmatpush1.msra.mxu0 0.0
        %2122 = vmatprep.subr.mxu0 0.0
        %2123 = vmatpush1.msra.mxu0 0.0
        %2124 = vmatprep.subr.mxu0 0.0
        %2125 = vmatpush1.msra.mxu0 0.0
        %2126 = vmatprep.subr.mxu0 0.0
        %2127 = vmatpush1.msra.mxu0 0.0
        %2128 = vmatprep.subr.mxu0 0.0
        %2129 = vmatpush1.msra.mxu0 0.0
        %2130 = vmatprep.subr.mxu0 0.0
        %2131 = vmatpush1.msra.mxu0 0.0
        %2132 = vmatprep.subr.mxu0 0.0
        %2133 = vmatpush1.msra.mxu0 0.0
        %2134 = vmatprep.subr.mxu0 0.0
        %2135 = vmatpush1.msra.mxu0 0.0
        %2136 = vmatprep.subr.mxu0 0.0
        %2137 = vmatpush1.msra.mxu0 0.0
        %2138 = vmatprep.subr.mxu0 0.0
        %2139 = vmatpush1.msra.mxu0 0.0
        %2140 = vmatprep.subr.mxu0 0.0
        %2141 = vmatpush1.msra.mxu0 0.0
        %2142 = vmatprep.subr.mxu0 0.0
        %2143 = vmatpush1.msra.mxu0 0.0
        %2144 = vmatprep.subr.mxu0 0.0
        %2145 = vmatpush1.msra.mxu0 0.0
        %2146 = vmatprep.subr.mxu0 0.0
        %2147 = vmatpush1.msra.mxu0 0.0
        %2148 = vmatprep.subr.mxu0 0.0
        %2149 = vmatpush1.msra.mxu0 0.0
        %2150 = vmatprep.subr.mxu0 0.0
        %2151 = vmatpush1.msra.mxu0 0.0
        %2152 = vmatprep.subr.mxu0 0.0
        %2153 = vmatpush1.msra.mxu0 0.0
        %2154 = vmatprep.subr.mxu0 0.0
        %2155 = vmatpush1.msra.mxu0 0.0
        %2156 = vmatprep.subr.mxu0 0.0
        %2157 = vmatpush1.msra.mxu0 0.0
        %2158 = vmatprep.mubr.f32.mxu0 0.0
        %2159 = vmatmul.mubr.f32.gmra.mrb[0].mxu0 %v2083
        %v2160 = vpop.f32.mrb[0].mxu0
        %v2161 = vadd.f32 %v1887, %v2160
        %v2162 = vpop.f32.mrb[0].mxu0
        %2163 = vmatprep.mubr.f32.mxu0 0.0
        %2164 = vmatmul.mubr.f32.gmra.mrb[0].mxu0 %v2086
        %v2165 = vpop.f32.mrb[0].mxu0
        %v2166 = vadd.f32 %v1892, %v2165
        %v2167 = vpop.f32.mrb[0].mxu0
        %2168 = vmatprep.mubr.f32.mxu0 0.0
        %2169 = vmatmul.mubr.f32.gmra.mrb[0].mxu0 %v2089
        %v2170 = vpop.f32.mrb[0].mxu0
        %v2171 = vadd.f32 %v1897, %v2170
        %v2172 = vpop.f32.mrb[0].mxu0
        %2173 = vmatprep.mubr.f32.mxu0 0.0
        %2174 = vmatmul.mubr.f32.gmra.mrb[0].mxu0 %v2092
        %v2175 = vpop.f32.mrb[0].mxu0
        %v2176 = vadd.f32 %v1902, %v2175
        %v2177 = vpop.f32.mrb[0].mxu0
        %2178 = vdwg.mxu0
        %v2179 = vadd.f32 %v2064, %v1963
        %v2180 = vadd.f32 %v2069, %v1966
        %v2181 = vadd.f32 %v2074, %v1969
        %v2182 = vadd.f32 %v2079, %v1972
        %v2183 = vadd.f32 %v2161, %v1975
        %v2184 = vadd.f32 %v2166, %v1978
        %v2185 = vadd.f32 %v2171, %v1981
        %v2186 = vadd.f32 %v2176, %v1984
        %2187 = vset.pattern.permute.xlu0 68
        %2188 = vperm.xlu0 %2187, %v1498
        %v2189 = vpop.permute.xlu0 %2188
        %2191 = vset.pattern.permute.xlu0 68
        %2192 = vperm.xlu0 %2191, %v1499
        %v2193 = vpop.permute.xlu0 %2192
        %2195 = vset.pattern.permute.xlu0 68
        %2196 = vperm.xlu0 %2195, %v1500
        %v2197 = vpop.permute.xlu0 %2196
        %2199 = vset.pattern.permute.xlu0 68
        %2200 = vperm.xlu0 %2199, %v1501
        %v2201 = vpop.permute.xlu0 %2200
        %v2203 = vadd.f32 %v2179, %v2189
        %v2204 = vadd.f32 %v2180, %v2193
        %v2205 = vadd.f32 %v2181, %v2197
        %v2206 = vadd.f32 %v2182, %v2201
        %v2207 = vadd.f32 %v2183, %v2189
        %v2208 = vadd.f32 %v2184, %v2193
        %v2209 = vadd.f32 %v2185, %v2197
        %v2210 = vadd.f32 %v2186, %v2201
        %v2211 = vtanh.pop %v2203
        %v2212 = vtanh.pop %v2204
        %v2213 = vtanh.pop %v2205
        %v2214 = vtanh.pop %v2206
        %v2215 = vtanh.pop %v2207
        %v2216 = vtanh.pop %v2208
        %v2217 = vtanh.pop %v2209
        %v2218 = vtanh.pop %v2210
        %2219 = vset.pattern.permute.xlu0 69
        %2220 = vperm.xlu0 %2219, %v1498
        %v2221 = vpop.permute.xlu0 %2220
        %2223 = vset.pattern.permute.xlu0 69
        %2224 = vperm.xlu0 %2223, %v1499
        %v2225 = vpop.permute.xlu0 %2224
        %2227 = vset.pattern.permute.xlu0 69
        %2228 = vperm.xlu0 %2227, %v1500
        %v2229 = vpop.permute.xlu0 %2228
        %2231 = vset.pattern.permute.xlu0 69
        %2232 = vperm.xlu0 %2231, %v1501
        %v2233 = vpop.permute.xlu0 %2232
        %v2235 = vmul.f32 %v2211, %v2221
        %v2236 = vmul.f32 %v2212, %v2225
        %v2237 = vmul.f32 %v2213, %v2229
        %v2238 = vmul.f32 %v2214, %v2233
        %v2239 = vmul.f32 %v2215, %v2221
        %v2240 = vmul.f32 %v2216, %v2225
        %v2241 = vmul.f32 %v2217, %v2229
        %v2242 = vmul.f32 %v2218, %v2233
        %v2243 = vadd.f32 %v2235, %v2236
        %v2244 = vadd.f32 %v2243, %v2237
        %v2245 = vadd.f32 %v2244, %v2238
        %v2246 = vrot.slane %v2245, 4
        %v2247 = vadd.f32 %v2245, %v2246
        %v2248 = vrot.slane %v2247, 2
        %v2249 = vadd.f32 %v2247, %v2248
        %v2250 = vrot.slane %v2249, 1
        %v2251 = vadd.f32 %v2249, %v2250
        %v2252 = vadd.f32 %v2239, %v2240
        %v2253 = vadd.f32 %v2252, %v2241
        %v2254 = vadd.f32 %v2253, %v2242
        %v2255 = vrot.slane %v2254, 4
        %v2256 = vadd.f32 %v2254, %v2255
        %v2257 = vrot.slane %v2256, 2
        %v2258 = vadd.f32 %v2256, %v2257
        %v2259 = vrot.slane %v2258, 1
        %v2260 = vadd.f32 %v2258, %v2259
        %2262 = vset.pattern.permute.xlu0 70
        %2263 = vperm.xlu0 %2262, %v1502
        %v2264 = vpop.permute.xlu0 %2263
        %v2266 = vadd.f32 %v2251, %v2264
        %v2267 = vadd.f32 %v2260, %v2264
        %v2268 = vld [vmem:[%s486] sm:$0x1]
        %v2269 = vld [vmem:[%s486 + $0x1] sm:$0x1]
        %vm2270 = vcmp.gt.f32.partialorder %v2268, 0.5
        %vm2271 = vcmp.gt.f32.partialorder %v2269, 0.5
        %v2272 = vsel %vm2270, -1e+30, %v2266
        %v2273 = vsel %vm2271, -1e+30, %v2267
        %vm2274 = vcmask 1040384
        %v2275 = vsel %vm2274, %v2272, -inf
        %2276 = vmax.xlane.f32.xlu0 %v2275
        %v2277 = vpop.xlane.xlu0 %2276
        %v2278 = vsel %vm2274, %v2273, -inf
        %2279 = vmax.xlane.f32.xlu0 %v2278
        %v2280 = vpop.xlane.xlu0 %2279
        %v2281 = vsub.f32 %v2272, %v2277
        %v2282 = vsub.f32 %v2273, %v2280
        %v2283 = vmul.f32 %v2281, 1.442695
        %v2284 = vpow.pop %v2283
        %v2285 = vmul.f32 %v2282, 1.442695
        %v2286 = vpow.pop %v2285
        %v2287 = vsel %vm2274, %v2284, 0.0
        %2288 = vadd.xlane.f32.xlu0 %v2287
        %v2289 = vpop.xlane.xlu0 %2288
        %v2290 = vsel %vm2274, %v2286, 0.0
        %2291 = vadd.xlane.f32.xlu0 %v2290
        %v2292 = vpop.xlane.xlu0 %2291
        %v2293 = vrcp.pop %v2289
        %v2294 = vrcp.pop %v2292
        %v2295 = vmul.f32 %v2284, %v2293
        %v2296 = vmul.f32 %v2286, %v2294
        %v2297 = vlaneseq
        %v2298 = vand.u32 %v2297, 127
        %vm2299 = vcmp.eq.s32.totalorder %v2298, 8
        %v2302 = vunpack.c.l.s4 1966171168
        %v2303 = vunpack.c.0.s8 %v2302
        %v2304 = vlaneseq
        %v2305 = vshrl.u32 %v2304, 7
        %v2306 = vsub.s32 %v2303, %v2305
        %v2307 = vrot.slane %v1497, %v2306
        %v2308 = vcombine.high %v2307, %v2307
        %v2310 = vunpack.c.l.s4 1966171168
        %v2311 = vunpack.c.0.s8 %v2310
        %v2312 = vlaneseq
        %v2313 = vshrl.u32 %v2312, 7
        %v2314 = vsub.s32 %v2311, %v2313
        %v2315 = vrot.slane %v2307, %v2314
        %v2317 = vunpack.c.l.s4 1966171168
        %v2318 = vunpack.c.0.s8 %v2317
        %v2319 = vlaneseq
        %v2320 = vshrl.u32 %v2319, 7
        %v2321 = vsub.s32 %v2318, %v2320
        %v2322 = vrot.slane %v2308, %v2321
        %2323 = vset.pattern.permute.xlu0 0
        %2324 = vperm.xlu0 %2323, %v2315
        %v2325 = vpop.permute.xlu0 %2324
        %v2327 = vlaneseq
        %v2328 = vshrl.u32 %v2327, 7
        %v2329 = vsub.s32 0, %v2328
        %v2330 = vrot.slane %v2325, %v2329
        %2331 = vset.pattern.permute.xlu0 0
        %2332 = vperm.xlu0 %2331, %v2322
        %v2333 = vpop.permute.xlu0 %2332
        %v2335 = vlaneseq
        %v2336 = vshrl.u32 %v2335, 7
        %v2337 = vsub.s32 0, %v2336
        %v2338 = vrot.slane %v2333, %v2337
        %v2339 = vsel %vm2299, %v2330, %v2295
        %v2340 = vsel %vm2299, %v2338, %v2296
        %2341 = vst [vmem:[%s555] sm:$0x1] %v2339
        %2342 = vst [vmem:[%s555 + $0x1] sm:$0x1] %v2340
        %s2343 = sand.u32 %s282, 1
        %s2344 = scalar_lea.sflag [#allocation4], %s2343
        %s2345 = sand.u32 %s282, 1
        %s2346 = smul.addr %s2345, 2
        %s2347 = scalar_lea.vmem [#allocation13], %s2346
        // Predicated region
        $region85: #{tpu_custom_call.1} parent=59 // pred_check
          %p2348 = pneg %p292
        $region86: #{tpu_custom_call.1} parent=59 // pred_check_branch
          %2350 = sbr.rel (%p2348) target = $region88
        $region87: #{tpu_custom_call.1} parent=59 // pred_region
          %s2351 = smul.u32 2, %s34
          %s2353 = ssub.s32 32, 32
          %2354 = vsyncadd %s2344, %s2353
          %s2355 = smul.addr %s2351, 16
          %s2356 = scalar_lea.hbm %s10, %s2355
          %s2357 = sshll.u32 %s2347, 4
          %s2358 = int_to_ptr.vmem [resolvable:$true] %s2357
          %2363 = dma.vmem_to_hbm [thread:$0]  %s2358, 32, %s2356, %s2344, 16, 16, 1
        $region88: #{tpu_custom_call.1} parent=59 // pred_fallthru
          _
      $region60: #{tpu_custom_call.1} parent=5 // pred_fallthru
        _
      %p2364 = scmp.le.s32.totalorder 2, %s29
      // Predicated region
      $region89: #{tpu_custom_call.1} parent=5 // pred_check
        %p2365 = pneg %p2364
      $region90: #{tpu_custom_call.1} parent=5 // pred_check_branch
        %2367 = sbr.rel (%p2365) target = $region92
      $region91: #{tpu_custom_call.1} parent=5 // pred_region
        %s2368 = ssub.s32 %s29, 2
        // Predicated region
        $region93: #{tpu_custom_call.1} parent=91 // pred_check
          %p2369 = pneg %p298
        $region94: #{tpu_custom_call.1} parent=91 // pred_check_branch
          %2371 = sbr.rel (%p2369) target = $region96
        $region95: #{tpu_custom_call.1} parent=91 // pred_region
          %s2372 = sand.u32 %s283, 1
          %s2373 = scalar_lea.sflag [#allocation4], %s2372
          %s2374 = sand.u32 %s283, 1
          %s2375 = smul.addr %s2374, 2
          %s2376 = scalar_lea.vmem [#allocation13], %s2375
          %2377 = dma.done %s2373, 32
        $region96: #{tpu_custom_call.1} parent=91 // pred_fallthru
          _
      $region92: #{tpu_custom_call.1} parent=5 // pred_fallthru
        _
    $region6: #{tpu_custom_call.1} parent=1 // loop_footer
      %s33 = sadd.s32 1, %s29
    $region7: #{tpu_custom_call.1} parent=1 // loop_footer_branch
      %28 = sbr.rel target = $region3
    $region8: #{tpu_custom_call.1} parent=1 // loop_exit
      _
    %2378 = vsyncpa [#allocation3], 1
    %s2379 = scalar_lea.sflag [#allocation3], 1
    %2380 = vsyncpa %s2379, 1
    %2381 = vsyncpa [#allocation6], 1
    %s2382 = scalar_lea.sflag [#allocation6], 1
    %2383 = vsyncpa %s2382, 1
    %2384 = vsyncpa [#allocation9], 1
    %s2385 = scalar_lea.sflag [#allocation9], 1
    %2386 = vsyncpa %s2385, 1
    %2387 = vsyncpa [#allocation12], 1
    %2388 = vsyncpa [#allocation4], 1
    %s2389 = scalar_lea.sflag [#allocation4], 1
    %2390 = vsyncpa %s2389, 1

</llo_original>
